<compile_context>
chip_gen: v7x
topology: tpu7x:2x2x1
jax: 0.10.0
libtpu: 0.0.40
codegen_flags: <defaults>
</compile_context>

<pallas_src>
import functools

import jax
import jax.numpy as jnp
from jax import lax
from jax.experimental import pallas as pl
from jax.experimental.pallas import tpu as pltpu

PAD_ID = 0


def _ceil_log2(n):
    return max(0, (int(n) - 1).bit_length())


# ----------------------------- fused Pallas kernel -----------------------------

def _pacrr_fused_kernel(q_ref, d_ref, idf_ref, mats_ref, cbias_ref, w1p_ref,
                        tail_ref, o_ref, *, ngram_sizes, NF, K, use_idf, Q, D, C,
                        nonlinearity):
    B = q_ref.shape[0]
    NFD = NF * D
    NGMAX = max(ngram_sizes)
    n_g = len(ngram_sizes)

    # ---- masked cosine similarity: rsqrt scales (EUP) + one bf16 MXU einsum ----
    q = q_ref[...]                                    # (B, Q, E) bf16, pad rows zero
    d = d_ref[...]                                    # (B, D, E) bf16, pad rows zero
    qf = q.astype(jnp.float32)
    df = d.astype(jnp.float32)
    inv_qn = lax.rsqrt(jnp.sum(qf * qf, axis=2, keepdims=True) + 1e-12)   # (B, Q, 1)
    inv_dn = lax.rsqrt(jnp.sum(df * df, axis=2, keepdims=True) + 1e-12)   # (B, D, 1)
    # Scale the doc side BEFORE the matmul (keeps its own sublane layout -> no
    # transpose), the query side AFTER (broadcasts along lanes of sim).
    db = (df * inv_dn).astype(jnp.bfloat16)
    raw = jnp.einsum("bqe,bde->bqd", q, db, preferred_element_type=jnp.float32)
    sim = raw * inv_qn                                                    # (B, Q, D)

    # ---- sublane-shifted slabs: R_i[b, q, :] = sim[b, q+i, :], zero past the end ----
    rowq = lax.broadcasted_iota(jnp.int32, (B, Q, 1), 1)
    shifted = [sim]
    for i in range(1, NGMAX):
        rolled = pltpu.roll(sim, shift=Q - i, axis=1)
        shifted.append(jnp.where(rowq < Q - i, rolled, 0.0))

    col = lax.broadcasted_iota(jnp.int32, (B, Q, D), 2)
    H = jnp.zeros((B, Q, C), jnp.float32)   # per-(q, feature) contributions to MLP-1
    nfl_steps = _ceil_log2(NF)

    t = 0      # feature column index (matches w1 row layout q*qterm + t)
    mo = 0     # row offset into the banded-matrix table
    for g, ng in enumerate(ngram_sizes):
        # Conv2d(1->NF, ng) + bias + ReLU: the banded matrices carry the column
        # shifts, the filter taps and the NF-way lane packing, so each n-gram is
        # just `ng` tiny batched MXU matmuls (the MXU is otherwise idle here).
        m0 = jnp.broadcast_to(mats_ref[mo], (B, D, NFD))
        acc = jnp.einsum("bqd,bdn->bqn", shifted[0], m0,
                         preferred_element_type=jnp.float32)
        for i in range(1, ng):
            mi = jnp.broadcast_to(mats_ref[mo + i], (B, D, NFD))
            acc = acc + jnp.einsum("bqd,bdn->bqn", shifted[i], mi,
                                   preferred_element_type=jnp.float32)
        mo += ng
        acc = jnp.maximum(acc + cbias_ref[g, :][None, None, :], 0.0)      # (B, Q, NF*D)

        # max over the NF lane-packed filters: log2(NF) roll-and-max butterfly.
        mx = acc
        sh = D
        for _ in range(nfl_steps):
            mx = jnp.maximum(mx, pltpu.roll(mx, shift=sh, axis=2))
            sh *= 2
        cur = mx[:, :, 0:D]                                               # (B, Q, D)

        # exact top-k (descending values) along the document axis.
        # ReLU output >= 0 and K <= D, so the -1 sentinel is never selected.
        for k in range(K):
            mval = jnp.max(cur, axis=2, keepdims=True)                    # (B, Q, 1)
            # contract this feature column straight into MLP layer 1
            H = H + mval * w1p_ref[t]                                     # (B, Q, C)
            t += 1
            if k + 1 < K:
                first = jnp.min(jnp.where(cur == mval, col, D), axis=2, keepdims=True)
                cur = jnp.where(col == first, -1.0, cur)

    acc1 = jnp.sum(H, axis=1)                                             # (B, C)

    if use_idf:
        idf = idf_ref[...]                                                # (B, Q)
        ex = jnp.exp(idf - jnp.max(idf, axis=1, keepdims=True))
        sm = ex * pl.reciprocal(jnp.sum(ex, axis=1, keepdims=True), approx=True)
        acc1 = acc1 + jnp.dot(sm, w1p_ref[t], preferred_element_type=jnp.float32)

    def act(x):
        if nonlinearity == "relu":
            return jnp.maximum(x, 0.0)
        if nonlinearity == "tanh":
            return jnp.tanh(x)
        return x

    # packed MLP tail: rows [0:C]=w2, C=b1, C+1=b2, C+2=w3^T, C+3=b3 (broadcast)
    w2 = tail_ref[0:C, :]
    b1 = tail_ref[C, :]
    b2 = tail_ref[C + 1, :]
    w3r = tail_ref[C + 2, :]
    b3 = tail_ref[C + 3, 0:1]

    h = act(acc1 + b1[None, :])
    h = act(jnp.dot(h, w2, preferred_element_type=jnp.float32) + b2[None, :])
    o_ref[...] = jnp.sum(h * w3r[None, :], axis=1, keepdims=True) + b3[None, :]


# ----------------------------- weight-table packing -----------------------------

def _build_conv_tables(convs, D, NF):
    """Fold column shifts + filter taps + NF-way lane packing into banded matrices.

    For n-gram g and row offset i, M[e, f*D + d] = w_g[f, 0, i, e-d] when
    0 <= e-d < ng else 0, so  conv_g = sum_i R_i @ M_{g,i}  reproduces the
    right/bottom zero-padded VALID Conv2d exactly.
    """
    e_idx = jnp.arange(D)[:, None]
    d_idx = jnp.arange(D)[None, :]
    diff = e_idx - d_idx                                    # (D, D)
    mats, biases = [], []
    for (w, b) in convs:                                    # w: (NF,1,ng,ng), b: (NF,)
        ng = w.shape[-1]
        valid = (diff >= 0) & (diff < ng)
        j_idx = jnp.clip(diff, 0, ng - 1)
        for i in range(ng):
            blocks = [jnp.where(valid, w[f, 0, i][j_idx], 0.0) for f in range(NF)]
            mats.append(jnp.concatenate(blocks, axis=1))    # (D, NF*D)
        biases.append(jnp.repeat(b, D))                     # (NF*D,)
    return (jnp.stack(mats, 0).astype(jnp.float32),         # (sum(ng), D, NF*D)
            jnp.stack(biases, 0).astype(jnp.float32))       # (n_g, NF*D)


# ----------------------------- full forward -----------------------------

def pacrr_forward(params, sentence, query_sentence, query_idf, cfg):
    emb = params["embedding"]
    # TODO(synk): data-dependent embedding gather left in plain JAX (no clean blocked-DMA win at this size).
    doc = jnp.take(emb, sentence, axis=0).astype(jnp.float32)
    query = jnp.take(emb, query_sentence, axis=0).astype(jnp.float32)

    # Fold the pad-token mask into the embeddings (zero rows -> exactly-zero simmat
    # rows/columns) and cast to bf16: single-pass MXU matmul + half the DMA bytes.
    qmask = (query_sentence != PAD_ID).astype(jnp.float32)[:, :, None]
    dmask = (sentence != PAD_ID).astype(jnp.float32)[:, :, None]
    query = (query * qmask).astype(jnp.bfloat16)
    doc = (doc * dmask).astype(jnp.bfloat16)

    B, Q, _E = query.shape
    D = doc.shape[1]
    ngram_sizes = tuple(cfg["ngram_sizes"])
    n_g = len(ngram_sizes)
    NF = cfg["nfilters"]
    K = cfg["kmax"]
    use_idf = bool(cfg["idf"])
    qterm = n_g * K + (1 if use_idf else 0)
    assert K <= D, "kmax must not exceed the document length"

    w1, b1, w2, b2, w3, b3 = params["mlp"]
    C = w1.shape[1]
    # w1 rows are indexed by (q * qterm + feature); pre-slice per feature column so
    # the kernel contracts each (B, Q) feature map directly into layer 1.
    w1p = w1.reshape(Q, qterm, C).transpose(1, 0, 2).astype(jnp.float32)   # (qterm, Q, C)

    conv_mats, conv_bias = _build_conv_tables(params["convs"], D, NF)

    # pack w2/b1/b2/w3/b3 into one VMEM slab -> fewer, larger operand DMAs.
    mlp_tail = jnp.concatenate([
        w2.astype(jnp.float32),                                        # rows 0..C-1
        b1.reshape(1, C).astype(jnp.float32),                          # row C
        b2.reshape(1, C).astype(jnp.float32),                          # row C+1
        w3.reshape(1, C).astype(jnp.float32),                          # row C+2
        jnp.broadcast_to(b3.reshape(1, 1), (1, C)).astype(jnp.float32),  # row C+3
    ], axis=0)                                                         # (C+4, C)

    kernel = functools.partial(
        _pacrr_fused_kernel, ngram_sizes=ngram_sizes, NF=NF, K=K, use_idf=use_idf,
        Q=Q, D=D, C=C, nonlinearity=cfg.get("nonlinearity", "relu"))

    vmem = pl.BlockSpec(memory_space=pltpu.MemorySpace.VMEM)

    # TODO(synk): on v7x a size-B "parallel" grid axis (or core_map) would feed both
    # TensorCores once B grows; kept grid-less here since B=2 and the path is
    # latency-bound (per-step overhead would cancel the win).
    return pl.pallas_call(
        kernel,
        out_shape=jax.ShapeDtypeStruct((B, 1), jnp.float32),
        in_specs=[vmem] * 7,
        out_specs=vmem,
    )(query, doc, query_idf.astype(jnp.float32), conv_mats, conv_bias, w1p, mlp_tail)


# ----------------------------- pure-JAX reference -----------------------------

def pacrr_reference(params, sentence, query_sentence, query_idf, cfg):
    emb = params["embedding"]
    doc = jnp.take(emb, sentence, axis=0)
    query = jnp.take(emb, query_sentence, axis=0)
    qn = jnp.sqrt(jnp.sum(query ** 2, axis=2, keepdims=True)) + 1e-9
    dn = jnp.sqrt(jnp.sum(doc ** 2, axis=2, keepdims=True)) + 1e-9
    sim = jnp.einsum("bqe,bde->bqd", query, doc) / (qn * jnp.swapaxes(dn, 1, 2))
    mask = (query_sentence[:, :, None] != PAD_ID) & (sentence[:, None, :] != PAD_ID)
    sim = jnp.where(mask, sim, 0.0)
    scores = []
    for ng, (w, b) in zip(cfg["ngram_sizes"], params["convs"]):
        x = jnp.pad(sim, ((0, 0), (0, ng - 1), (0, ng - 1)))[:, None]  # NCHW
        conv = lax.conv_general_dilated(x, w, (1, 1), "VALID",
                                        dimension_numbers=("NCHW", "OIHW", "NCHW"))
        conv = jnp.maximum(conv + b[None, :, None, None], 0.0)
        scores.append(lax.top_k(jnp.max(conv, axis=1), cfg["kmax"])[0])
    if cfg["idf"]:
        scores.append(jax.nn.softmax(query_idf.astype(jnp.float32), axis=1)[:, :, None])
    s = jnp.concatenate(scores, axis=2).reshape(sentence.shape[0], -1)
    w1, b1, w2, b2, w3, b3 = params["mlp"]

    def act(x):
        nl = cfg.get("nonlinearity", "relu")
        if nl == "relu":
            return jnp.maximum(x, 0.0)
        if nl == "tanh":
            return jnp.tanh(x)
        return x

    h = act(s @ w1 + b1)
    h = act(h @ w2 + b2)
    return h @ w3 + b3


# ----------------------------- main -----------------------------

if __name__ == "__main__":
    B, QLEN, DLEN, EMB, VOCAB = 2, 8, 16, 32, 64
    cfg = dict(ngram_sizes=(1, 2, 3),   # mingram=1, maxgram=3
               nfilters=4, kmax=2, idf=True, combine=32, nonlinearity="relu")

    key = jax.random.PRNGKey(0)
    ks = jax.random.split(key, 16)

    embedding = jax.random.normal(ks[0], (VOCAB, EMB), jnp.float32)
    convs = []
    for idx, ng in enumerate(cfg["ngram_sizes"]):
        w = 0.3 * jax.random.normal(ks[1 + idx], (cfg["nfilters"], 1, ng, ng), jnp.float32)
        b = 0.1 * jax.random.normal(ks[4 + idx], (cfg["nfilters"],), jnp.float32)
        convs.append((w, b))
    qterm = len(cfg["ngram_sizes"]) * cfg["kmax"] + (1 if cfg["idf"] else 0)
    f_in, C = QLEN * qterm, cfg["combine"]
    w1 = 0.2 * jax.random.normal(ks[7], (f_in, C), jnp.float32)
    b1 = 0.05 * jax.random.normal(ks[8], (C,), jnp.float32)
    w2 = 0.2 * jax.random.normal(ks[9], (C, C), jnp.float32)
    b2 = 0.05 * jax.random.normal(ks[10], (C,), jnp.float32)
    w3 = 0.2 * jax.random.normal(ks[11], (C, 1), jnp.float32)
    b3 = 0.05 * jax.random.normal(ks[12], (1,), jnp.float32)
    params = dict(embedding=embedding, convs=convs, mlp=(w1, b1, w2, b2, w3, b3))

    sentence = jax.random.randint(ks[13], (B, DLEN), 1, VOCAB).astype(jnp.int32)
    sentence = sentence.at[:, DLEN - 3:].set(PAD_ID)              # padded doc tail
    query_sentence = jax.random.randint(ks[14], (B, QLEN), 1, VOCAB).astype(jnp.int32)
    query_sentence = query_sentence.at[:, QLEN - 2:].set(PAD_ID)  # padded query tail
    query_idf = jax.random.uniform(ks[15], (B, QLEN), jnp.float32)

    out = pacrr_forward(params, sentence, query_sentence, query_idf, cfg)
    out = jax.block_until_ready(out)

    ref = pacrr_reference(params, sentence, query_sentence, query_idf, cfg)
    assert out.shape == (B, 1), out.shape
    assert jnp.allclose(out, ref, rtol=2e-2, atol=2e-2), (out, ref)
    print("KERNEL_OK")
</pallas_src>

<mosaic_0001>
module attributes {stable_mosaic.version = 11 : i64} {
  func.func @_pacrr_fused_kernel(%arg0: memref<2x8x32xbf16, #tpu.memory_space<vmem>>, %arg1: memref<2x16x32xbf16, #tpu.memory_space<vmem>>, %arg2: memref<2x8xf32, #tpu.memory_space<vmem>>, %arg3: memref<6x16x64xf32, #tpu.memory_space<vmem>>, %arg4: memref<3x64xf32, #tpu.memory_space<vmem>>, %arg5: memref<7x8x32xf32, #tpu.memory_space<vmem>>, %arg6: memref<36x32xf32, #tpu.memory_space<vmem>>, %arg7: memref<2x1xf32, #tpu.memory_space<vmem>>) attributes {dimension_semantics = [], scalar_prefetch = 0 : i64, scratch_operands = 0 : i64, tpu.core_type = #tpu.core_type<tc>} {
    %c0 = arith.constant 0 : index
    %c0_0 = arith.constant 0 : index
    %c0_1 = arith.constant 0 : index
    %0 = vector.load %arg0[%c0, %c0_0, %c0_1] : memref<2x8x32xbf16, #tpu.memory_space<vmem>>, vector<2x8x32xbf16>
    %c0_2 = arith.constant 0 : index
    %c0_3 = arith.constant 0 : index
    %c0_4 = arith.constant 0 : index
    %1 = vector.load %arg1[%c0_2, %c0_3, %c0_4] : memref<2x16x32xbf16, #tpu.memory_space<vmem>>, vector<2x16x32xbf16>
    %2 = arith.extf %0 : vector<2x8x32xbf16> to vector<2x8x32xf32>
    %3 = arith.extf %1 : vector<2x16x32xbf16> to vector<2x16x32xf32>
    %4 = arith.mulf %2, %2 : vector<2x8x32xf32>
    %cst = arith.constant dense<0.000000e+00> : vector<2x8xf32>
    %5 = vector.multi_reduction <add>, %4, %cst [2] : vector<2x8x32xf32> to vector<2x8xf32>
    %6 = vector.shape_cast %5 : vector<2x8xf32> to vector<2x8x1xf32>
    %cst_5 = arith.constant 9.99999996E-13 : f32
    %7 = vector.broadcast %cst_5 : f32 to vector<2x8x1xf32>
    %8 = arith.addf %6, %7 : vector<2x8x1xf32>
    %9 = math.rsqrt %8 : vector<2x8x1xf32>
    %10 = arith.mulf %3, %3 : vector<2x16x32xf32>
    %cst_6 = arith.constant dense<0.000000e+00> : vector<2x16xf32>
    %11 = vector.multi_reduction <add>, %10, %cst_6 [2] : vector<2x16x32xf32> to vector<2x16xf32>
    %12 = vector.shape_cast %11 : vector<2x16xf32> to vector<2x16x1xf32>
    %cst_7 = arith.constant 9.99999996E-13 : f32
    %13 = vector.broadcast %cst_7 : f32 to vector<2x16x1xf32>
    %14 = arith.addf %12, %13 : vector<2x16x1xf32>
    %15 = math.rsqrt %14 : vector<2x16x1xf32>
    %16 = vector.broadcast %15 : vector<2x16x1xf32> to vector<2x16x32xf32>
    %17 = arith.mulf %3, %16 : vector<2x16x32xf32>
    %18 = arith.truncf %17 : vector<2x16x32xf32> to vector<2x16x32xbf16>
    "tpu.trace_start"() <{level = 10 : i32, message = "bqe,bde->bqd"}> : () -> ()
    %cst_8 = arith.constant dense<0.000000e+00> : vector<2x8x16xf32>
    %19 = tpu.matmul %0, %18, %cst_8 {dimension_numbers = #tpu.dot_dimension_numbers<[2], [2], [1], [1], [0, 0, 0, 1, 1, 1], [0], [0]>} : vector<2x8x32xbf16>, vector<2x16x32xbf16>, vector<2x8x16xf32> -> vector<2x8x16xf32>
    "tpu.trace_stop"() : () -> ()
    %20 = vector.broadcast %9 : vector<2x8x1xf32> to vector<2x8x16xf32>
    %21 = arith.mulf %19, %20 : vector<2x8x16xf32>
    %22 = tpu.iota {dimensions = array<i32: 1>} : vector<2x8x1xi32>
    %c7_i32 = arith.constant 7 : i32
    %23 = tpu.dynamic_rotate %21 by %c7_i32 dim 1 : vector<2x8x16xf32>, i32 -> vector<2x8x16xf32>
    %c7_i32_9 = arith.constant 7 : i32
    %24 = vector.broadcast %c7_i32_9 : i32 to vector<2x8x1xi32>
    %25 = arith.cmpi slt, %22, %24 : vector<2x8x1xi32>
    %cst_10 = arith.constant 0.000000e+00 : f32
    %26 = vector.shape_cast %25 : vector<2x8x1xi1> to vector<2x8x1xi1>
    %27 = vector.broadcast %26 : vector<2x8x1xi1> to vector<2x8x16xi1>
    %28 = vector.broadcast %cst_10 : f32 to vector<2x8x16xf32>
    %29 = arith.select %27, %23, %28 : vector<2x8x16xi1>, vector<2x8x16xf32>
    %c6_i32 = arith.constant 6 : i32
    %30 = tpu.dynamic_rotate %21 by %c6_i32 dim 1 : vector<2x8x16xf32>, i32 -> vector<2x8x16xf32>
    %c6_i32_11 = arith.constant 6 : i32
    %31 = vector.broadcast %c6_i32_11 : i32 to vector<2x8x1xi32>
    %32 = arith.cmpi slt, %22, %31 : vector<2x8x1xi32>
    %cst_12 = arith.constant 0.000000e+00 : f32
    %33 = vector.shape_cast %32 : vector<2x8x1xi1> to vector<2x8x1xi1>
    %34 = vector.broadcast %33 : vector<2x8x1xi1> to vector<2x8x16xi1>
    %35 = vector.broadcast %cst_12 : f32 to vector<2x8x16xf32>
    %36 = arith.select %34, %30, %35 : vector<2x8x16xi1>, vector<2x8x16xf32>
    %37 = tpu.iota {dimensions = array<i32: 2>} : vector<2x8x16xi32>
    %cst_13 = arith.constant 0.000000e+00 : f32
    %38 = vector.broadcast %cst_13 : f32 to vector<2x8x32xf32>
    %c0_14 = arith.constant 0 : index
    %c0_15 = arith.constant 0 : index
    %c0_16 = arith.constant 0 : index
    %39 = vector.load %arg3[%c0_14, %c0_15, %c0_16] : memref<6x16x64xf32, #tpu.memory_space<vmem>>, vector<1x16x64xf32>
    %40 = vector.shape_cast %39 : vector<1x16x64xf32> to vector<16x64xf32>
    %41 = vector.shape_cast %40 : vector<16x64xf32> to vector<1x16x64xf32>
    %42 = vector.broadcast %41 : vector<1x16x64xf32> to vector<2x16x64xf32>
    "tpu.trace_start"() <{level = 10 : i32, message = "bqd,bdn->bqn"}> : () -> ()
    %cst_17 = arith.constant dense<0.000000e+00> : vector<2x8x64xf32>
    %43 = tpu.matmul %21, %42, %cst_17 {dimension_numbers = #tpu.dot_dimension_numbers<[2], [1], [1], [2], [0, 0, 0, 1, 1, 2], [0], [0]>} : vector<2x8x16xf32>, vector<2x16x64xf32>, vector<2x8x64xf32> -> vector<2x8x64xf32>
    "tpu.trace_stop"() : () -> ()
    %c0_18 = arith.constant 0 : index
    %c0_19 = arith.constant 0 : index
    %44 = vector.load %arg4[%c0_18, %c0_19] : memref<3x64xf32, #tpu.memory_space<vmem>>, vector<1x64xf32>
    %45 = vector.shape_cast %44 : vector<1x64xf32> to vector<64xf32>
    %46 = vector.shape_cast %45 : vector<64xf32> to vector<1x1x64xf32>
    %47 = vector.broadcast %46 : vector<1x1x64xf32> to vector<2x8x64xf32>
    %48 = arith.addf %43, %47 : vector<2x8x64xf32>
    %cst_20 = arith.constant 0.000000e+00 : f32
    %49 = vector.broadcast %cst_20 : f32 to vector<2x8x64xf32>
    %50 = arith.maximumf %48, %49 : vector<2x8x64xf32>
    %c16_i32 = arith.constant 16 : i32
    %51 = tpu.dynamic_rotate %50 by %c16_i32 dim 2 : vector<2x8x64xf32>, i32 -> vector<2x8x64xf32>
    %52 = arith.maximumf %50, %51 : vector<2x8x64xf32>
    %c32_i32 = arith.constant 32 : i32
    %53 = tpu.dynamic_rotate %52 by %c32_i32 dim 2 : vector<2x8x64xf32>, i32 -> vector<2x8x64xf32>
    %54 = arith.maximumf %52, %53 : vector<2x8x64xf32>
    %55 = vector.extract_strided_slice %54 {offsets = [0, 0, 0], sizes = [2, 8, 16], strides = [1, 1, 1]} : vector<2x8x64xf32> to vector<2x8x16xf32>
    %cst_21 = arith.constant dense<0xFF800000> : vector<2x8xf32>
    %56 = vector.multi_reduction <maximumf>, %55, %cst_21 [2] : vector<2x8x16xf32> to vector<2x8xf32>
    %57 = vector.shape_cast %56 : vector<2x8xf32> to vector<2x8x1xf32>
    %c0_22 = arith.constant 0 : index
    %c0_23 = arith.constant 0 : index
    %c0_24 = arith.constant 0 : index
    %58 = vector.load %arg5[%c0_22, %c0_23, %c0_24] : memref<7x8x32xf32, #tpu.memory_space<vmem>>, vector<1x8x32xf32>
    %59 = vector.shape_cast %58 : vector<1x8x32xf32> to vector<8x32xf32>
    %60 = vector.shape_cast %59 : vector<8x32xf32> to vector<1x8x32xf32>
    %61 = vector.broadcast %57 : vector<2x8x1xf32> to vector<2x8x32xf32>
    %62 = vector.broadcast %60 : vector<1x8x32xf32> to vector<2x8x32xf32>
    %63 = arith.mulf %61, %62 : vector<2x8x32xf32>
    %64 = arith.addf %38, %63 : vector<2x8x32xf32>
    %65 = vector.broadcast %57 : vector<2x8x1xf32> to vector<2x8x16xf32>
    %66 = arith.cmpf oeq, %55, %65 : vector<2x8x16xf32>
    %c16_i32_25 = arith.constant 16 : i32
    %67 = vector.broadcast %c16_i32_25 : i32 to vector<2x8x16xi32>
    %68 = arith.select %66, %37, %67 : vector<2x8x16xi1>, vector<2x8x16xi32>
    %cst_26 = arith.constant dense<2147483647> : vector<2x8xi32>
    %69 = vector.multi_reduction <minsi>, %68, %cst_26 [2] : vector<2x8x16xi32> to vector<2x8xi32>
    %70 = vector.shape_cast %69 : vector<2x8xi32> to vector<2x8x1xi32>
    %71 = vector.broadcast %70 : vector<2x8x1xi32> to vector<2x8x16xi32>
    %72 = arith.cmpi eq, %37, %71 : vector<2x8x16xi32>
    %cst_27 = arith.constant -1.000000e+00 : f32
    %73 = vector.broadcast %cst_27 : f32 to vector<2x8x16xf32>
    %74 = arith.select %72, %73, %55 : vector<2x8x16xi1>, vector<2x8x16xf32>
    %cst_28 = arith.constant dense<0xFF800000> : vector<2x8xf32>
    %75 = vector.multi_reduction <maximumf>, %74, %cst_28 [2] : vector<2x8x16xf32> to vector<2x8xf32>
    %76 = vector.shape_cast %75 : vector<2x8xf32> to vector<2x8x1xf32>
    %c1 = arith.constant 1 : index
    %c0_29 = arith.constant 0 : index
    %c0_30 = arith.constant 0 : index
    %77 = vector.load %arg5[%c1, %c0_29, %c0_30] : memref<7x8x32xf32, #tpu.memory_space<vmem>>, vector<1x8x32xf32>
    %78 = vector.shape_cast %77 : vector<1x8x32xf32> to vector<8x32xf32>
    %79 = vector.shape_cast %78 : vector<8x32xf32> to vector<1x8x32xf32>
    %80 = vector.broadcast %76 : vector<2x8x1xf32> to vector<2x8x32xf32>
    %81 = vector.broadcast %79 : vector<1x8x32xf32> to vector<2x8x32xf32>
    %82 = arith.mulf %80, %81 : vector<2x8x32xf32>
    %83 = arith.addf %64, %82 : vector<2x8x32xf32>
    %c1_31 = arith.constant 1 : index
    %c0_32 = arith.constant 0 : index
    %c0_33 = arith.constant 0 : index
    %84 = vector.load %arg3[%c1_31, %c0_32, %c0_33] : memref<6x16x64xf32, #tpu.memory_space<vmem>>, vector<1x16x64xf32>
    %85 = vector.shape_cast %84 : vector<1x16x64xf32> to vector<16x64xf32>
    %86 = vector.shape_cast %85 : vector<16x64xf32> to vector<1x16x64xf32>
    %87 = vector.broadcast %86 : vector<1x16x64xf32> to vector<2x16x64xf32>
    "tpu.trace_start"() <{level = 10 : i32, message = "bqd,bdn->bqn"}> : () -> ()
    %cst_34 = arith.constant dense<0.000000e+00> : vector<2x8x64xf32>
    %88 = tpu.matmul %21, %87, %cst_34 {dimension_numbers = #tpu.dot_dimension_numbers<[2], [1], [1], [2], [0, 0, 0, 1, 1, 2], [0], [0]>} : vector<2x8x16xf32>, vector<2x16x64xf32>, vector<2x8x64xf32> -> vector<2x8x64xf32>
    "tpu.trace_stop"() : () -> ()
    %c2 = arith.constant 2 : index
    %c0_35 = arith.constant 0 : index
    %c0_36 = arith.constant 0 : index
    %89 = vector.load %arg3[%c2, %c0_35, %c0_36] : memref<6x16x64xf32, #tpu.memory_space<vmem>>, vector<1x16x64xf32>
    %90 = vector.shape_cast %89 : vector<1x16x64xf32> to vector<16x64xf32>
    %91 = vector.shape_cast %90 : vector<16x64xf32> to vector<1x16x64xf32>
    %92 = vector.broadcast %91 : vector<1x16x64xf32> to vector<2x16x64xf32>
    "tpu.trace_start"() <{level = 10 : i32, message = "bqd,bdn->bqn"}> : () -> ()
    %cst_37 = arith.constant dense<0.000000e+00> : vector<2x8x64xf32>
    %93 = tpu.matmul %29, %92, %cst_37 {dimension_numbers = #tpu.dot_dimension_numbers<[2], [1], [1], [2], [0, 0, 0, 1, 1, 2], [0], [0]>} : vector<2x8x16xf32>, vector<2x16x64xf32>, vector<2x8x64xf32> -> vector<2x8x64xf32>
    "tpu.trace_stop"() : () -> ()
    %94 = arith.addf %88, %93 : vector<2x8x64xf32>
    %c1_38 = arith.constant 1 : index
    %c0_39 = arith.constant 0 : index
    %95 = vector.load %arg4[%c1_38, %c0_39] : memref<3x64xf32, #tpu.memory_space<vmem>>, vector<1x64xf32>
    %96 = vector.shape_cast %95 : vector<1x64xf32> to vector<64xf32>
    %97 = vector.shape_cast %96 : vector<64xf32> to vector<1x1x64xf32>
    %98 = vector.broadcast %97 : vector<1x1x64xf32> to vector<2x8x64xf32>
    %99 = arith.addf %94, %98 : vector<2x8x64xf32>
    %cst_40 = arith.constant 0.000000e+00 : f32
    %100 = vector.broadcast %cst_40 : f32 to vector<2x8x64xf32>
    %101 = arith.maximumf %99, %100 : vector<2x8x64xf32>
    %c16_i32_41 = arith.constant 16 : i32
    %102 = tpu.dynamic_rotate %101 by %c16_i32_41 dim 2 : vector<2x8x64xf32>, i32 -> vector<2x8x64xf32>
    %103 = arith.maximumf %101, %102 : vector<2x8x64xf32>
    %c32_i32_42 = arith.constant 32 : i32
    %104 = tpu.dynamic_rotate %103 by %c32_i32_42 dim 2 : vector<2x8x64xf32>, i32 -> vector<2x8x64xf32>
    %105 = arith.maximumf %103, %104 : vector<2x8x64xf32>
    %106 = vector.extract_strided_slice %105 {offsets = [0, 0, 0], sizes = [2, 8, 16], strides = [1, 1, 1]} : vector<2x8x64xf32> to vector<2x8x16xf32>
    %cst_43 = arith.constant dense<0xFF800000> : vector<2x8xf32>
    %107 = vector.multi_reduction <maximumf>, %106, %cst_43 [2] : vector<2x8x16xf32> to vector<2x8xf32>
    %108 = vector.shape_cast %107 : vector<2x8xf32> to vector<2x8x1xf32>
    %c2_44 = arith.constant 2 : index
    %c0_45 = arith.constant 0 : index
    %c0_46 = arith.constant 0 : index
    %109 = vector.load %arg5[%c2_44, %c0_45, %c0_46] : memref<7x8x32xf32, #tpu.memory_space<vmem>>, vector<1x8x32xf32>
    %110 = vector.shape_cast %109 : vector<1x8x32xf32> to vector<8x32xf32>
    %111 = vector.shape_cast %110 : vector<8x32xf32> to vector<1x8x32xf32>
    %112 = vector.broadcast %108 : vector<2x8x1xf32> to vector<2x8x32xf32>
    %113 = vector.broadcast %111 : vector<1x8x32xf32> to vector<2x8x32xf32>
    %114 = arith.mulf %112, %113 : vector<2x8x32xf32>
    %115 = arith.addf %83, %114 : vector<2x8x32xf32>
    %116 = vector.broadcast %108 : vector<2x8x1xf32> to vector<2x8x16xf32>
    %117 = arith.cmpf oeq, %106, %116 : vector<2x8x16xf32>
    %c16_i32_47 = arith.constant 16 : i32
    %118 = vector.broadcast %c16_i32_47 : i32 to vector<2x8x16xi32>
    %119 = arith.select %117, %37, %118 : vector<2x8x16xi1>, vector<2x8x16xi32>
    %cst_48 = arith.constant dense<2147483647> : vector<2x8xi32>
    %120 = vector.multi_reduction <minsi>, %119, %cst_48 [2] : vector<2x8x16xi32> to vector<2x8xi32>
    %121 = vector.shape_cast %120 : vector<2x8xi32> to vector<2x8x1xi32>
    %122 = vector.broadcast %121 : vector<2x8x1xi32> to vector<2x8x16xi32>
    %123 = arith.cmpi eq, %37, %122 : vector<2x8x16xi32>
    %cst_49 = arith.constant -1.000000e+00 : f32
    %124 = vector.broadcast %cst_49 : f32 to vector<2x8x16xf32>
    %125 = arith.select %123, %124, %106 : vector<2x8x16xi1>, vector<2x8x16xf32>
    %cst_50 = arith.constant dense<0xFF800000> : vector<2x8xf32>
    %126 = vector.multi_reduction <maximumf>, %125, %cst_50 [2] : vector<2x8x16xf32> to vector<2x8xf32>
    %127 = vector.shape_cast %126 : vector<2x8xf32> to vector<2x8x1xf32>
    %c3 = arith.constant 3 : index
    %c0_51 = arith.constant 0 : index
    %c0_52 = arith.constant 0 : index
    %128 = vector.load %arg5[%c3, %c0_51, %c0_52] : memref<7x8x32xf32, #tpu.memory_space<vmem>>, vector<1x8x32xf32>
    %129 = vector.shape_cast %128 : vector<1x8x32xf32> to vector<8x32xf32>
    %130 = vector.shape_cast %129 : vector<8x32xf32> to vector<1x8x32xf32>
    %131 = vector.broadcast %127 : vector<2x8x1xf32> to vector<2x8x32xf32>
    %132 = vector.broadcast %130 : vector<1x8x32xf32> to vector<2x8x32xf32>
    %133 = arith.mulf %131, %132 : vector<2x8x32xf32>
    %134 = arith.addf %115, %133 : vector<2x8x32xf32>
    %c3_53 = arith.constant 3 : index
    %c0_54 = arith.constant 0 : index
    %c0_55 = arith.constant 0 : index
    %135 = vector.load %arg3[%c3_53, %c0_54, %c0_55] : memref<6x16x64xf32, #tpu.memory_space<vmem>>, vector<1x16x64xf32>
    %136 = vector.shape_cast %135 : vector<1x16x64xf32> to vector<16x64xf32>
    %137 = vector.shape_cast %136 : vector<16x64xf32> to vector<1x16x64xf32>
    %138 = vector.broadcast %137 : vector<1x16x64xf32> to vector<2x16x64xf32>
    "tpu.trace_start"() <{level = 10 : i32, message = "bqd,bdn->bqn"}> : () -> ()
    %cst_56 = arith.constant dense<0.000000e+00> : vector<2x8x64xf32>
    %139 = tpu.matmul %21, %138, %cst_56 {dimension_numbers = #tpu.dot_dimension_numbers<[2], [1], [1], [2], [0, 0, 0, 1, 1, 2], [0], [0]>} : vector<2x8x16xf32>, vector<2x16x64xf32>, vector<2x8x64xf32> -> vector<2x8x64xf32>
    "tpu.trace_stop"() : () -> ()
    %c4 = arith.constant 4 : index
    %c0_57 = arith.constant 0 : index
    %c0_58 = arith.constant 0 : index
    %140 = vector.load %arg3[%c4, %c0_57, %c0_58] : memref<6x16x64xf32, #tpu.memory_space<vmem>>, vector<1x16x64xf32>
    %141 = vector.shape_cast %140 : vector<1x16x64xf32> to vector<16x64xf32>
    %142 = vector.shape_cast %141 : vector<16x64xf32> to vector<1x16x64xf32>
    %143 = vector.broadcast %142 : vector<1x16x64xf32> to vector<2x16x64xf32>
    "tpu.trace_start"() <{level = 10 : i32, message = "bqd,bdn->bqn"}> : () -> ()
    %cst_59 = arith.constant dense<0.000000e+00> : vector<2x8x64xf32>
    %144 = tpu.matmul %29, %143, %cst_59 {dimension_numbers = #tpu.dot_dimension_numbers<[2], [1], [1], [2], [0, 0, 0, 1, 1, 2], [0], [0]>} : vector<2x8x16xf32>, vector<2x16x64xf32>, vector<2x8x64xf32> -> vector<2x8x64xf32>
    "tpu.trace_stop"() : () -> ()
    %145 = arith.addf %139, %144 : vector<2x8x64xf32>
    %c5 = arith.constant 5 : index
    %c0_60 = arith.constant 0 : index
    %c0_61 = arith.constant 0 : index
    %146 = vector.load %arg3[%c5, %c0_60, %c0_61] : memref<6x16x64xf32, #tpu.memory_space<vmem>>, vector<1x16x64xf32>
    %147 = vector.shape_cast %146 : vector<1x16x64xf32> to vector<16x64xf32>
    %148 = vector.shape_cast %147 : vector<16x64xf32> to vector<1x16x64xf32>
    %149 = vector.broadcast %148 : vector<1x16x64xf32> to vector<2x16x64xf32>
    "tpu.trace_start"() <{level = 10 : i32, message = "bqd,bdn->bqn"}> : () -> ()
    %cst_62 = arith.constant dense<0.000000e+00> : vector<2x8x64xf32>
    %150 = tpu.matmul %36, %149, %cst_62 {dimension_numbers = #tpu.dot_dimension_numbers<[2], [1], [1], [2], [0, 0, 0, 1, 1, 2], [0], [0]>} : vector<2x8x16xf32>, vector<2x16x64xf32>, vector<2x8x64xf32> -> vector<2x8x64xf32>
    "tpu.trace_stop"() : () -> ()
    %151 = arith.addf %145, %150 : vector<2x8x64xf32>
    %c2_63 = arith.constant 2 : index
    %c0_64 = arith.constant 0 : index
    %152 = vector.load %arg4[%c2_63, %c0_64] : memref<3x64xf32, #tpu.memory_space<vmem>>, vector<1x64xf32>
    %153 = vector.shape_cast %152 : vector<1x64xf32> to vector<64xf32>
    %154 = vector.shape_cast %153 : vector<64xf32> to vector<1x1x64xf32>
    %155 = vector.broadcast %154 : vector<1x1x64xf32> to vector<2x8x64xf32>
    %156 = arith.addf %151, %155 : vector<2x8x64xf32>
    %cst_65 = arith.constant 0.000000e+00 : f32
    %157 = vector.broadcast %cst_65 : f32 to vector<2x8x64xf32>
    %158 = arith.maximumf %156, %157 : vector<2x8x64xf32>
    %c16_i32_66 = arith.constant 16 : i32
    %159 = tpu.dynamic_rotate %158 by %c16_i32_66 dim 2 : vector<2x8x64xf32>, i32 -> vector<2x8x64xf32>
    %160 = arith.maximumf %158, %159 : vector<2x8x64xf32>
    %c32_i32_67 = arith.constant 32 : i32
    %161 = tpu.dynamic_rotate %160 by %c32_i32_67 dim 2 : vector<2x8x64xf32>, i32 -> vector<2x8x64xf32>
    %162 = arith.maximumf %160, %161 : vector<2x8x64xf32>
    %163 = vector.extract_strided_slice %162 {offsets = [0, 0, 0], sizes = [2, 8, 16], strides = [1, 1, 1]} : vector<2x8x64xf32> to vector<2x8x16xf32>
    %cst_68 = arith.constant dense<0xFF800000> : vector<2x8xf32>
    %164 = vector.multi_reduction <maximumf>, %163, %cst_68 [2] : vector<2x8x16xf32> to vector<2x8xf32>
    %165 = vector.shape_cast %164 : vector<2x8xf32> to vector<2x8x1xf32>
    %c4_69 = arith.constant 4 : index
    %c0_70 = arith.constant 0 : index
    %c0_71 = arith.constant 0 : index
    %166 = vector.load %arg5[%c4_69, %c0_70, %c0_71] : memref<7x8x32xf32, #tpu.memory_space<vmem>>, vector<1x8x32xf32>
    %167 = vector.shape_cast %166 : vector<1x8x32xf32> to vector<8x32xf32>
    %168 = vector.shape_cast %167 : vector<8x32xf32> to vector<1x8x32xf32>
    %169 = vector.broadcast %165 : vector<2x8x1xf32> to vector<2x8x32xf32>
    %170 = vector.broadcast %168 : vector<1x8x32xf32> to vector<2x8x32xf32>
    %171 = arith.mulf %169, %170 : vector<2x8x32xf32>
    %172 = arith.addf %134, %171 : vector<2x8x32xf32>
    %173 = vector.broadcast %165 : vector<2x8x1xf32> to vector<2x8x16xf32>
    %174 = arith.cmpf oeq, %163, %173 : vector<2x8x16xf32>
    %c16_i32_72 = arith.constant 16 : i32
    %175 = vector.broadcast %c16_i32_72 : i32 to vector<2x8x16xi32>
    %176 = arith.select %174, %37, %175 : vector<2x8x16xi1>, vector<2x8x16xi32>
    %cst_73 = arith.constant dense<2147483647> : vector<2x8xi32>
    %177 = vector.multi_reduction <minsi>, %176, %cst_73 [2] : vector<2x8x16xi32> to vector<2x8xi32>
    %178 = vector.shape_cast %177 : vector<2x8xi32> to vector<2x8x1xi32>
    %179 = vector.broadcast %178 : vector<2x8x1xi32> to vector<2x8x16xi32>
    %180 = arith.cmpi eq, %37, %179 : vector<2x8x16xi32>
    %cst_74 = arith.constant -1.000000e+00 : f32
    %181 = vector.broadcast %cst_74 : f32 to vector<2x8x16xf32>
    %182 = arith.select %180, %181, %163 : vector<2x8x16xi1>, vector<2x8x16xf32>
    %cst_75 = arith.constant dense<0xFF800000> : vector<2x8xf32>
    %183 = vector.multi_reduction <maximumf>, %182, %cst_75 [2] : vector<2x8x16xf32> to vector<2x8xf32>
    %184 = vector.shape_cast %183 : vector<2x8xf32> to vector<2x8x1xf32>
    %c5_76 = arith.constant 5 : index
    %c0_77 = arith.constant 0 : index
    %c0_78 = arith.constant 0 : index
    %185 = vector.load %arg5[%c5_76, %c0_77, %c0_78] : memref<7x8x32xf32, #tpu.memory_space<vmem>>, vector<1x8x32xf32>
    %186 = vector.shape_cast %185 : vector<1x8x32xf32> to vector<8x32xf32>
    %187 = vector.shape_cast %186 : vector<8x32xf32> to vector<1x8x32xf32>
    %188 = vector.broadcast %184 : vector<2x8x1xf32> to vector<2x8x32xf32>
    %189 = vector.broadcast %187 : vector<1x8x32xf32> to vector<2x8x32xf32>
    %190 = arith.mulf %188, %189 : vector<2x8x32xf32>
    %191 = arith.addf %172, %190 : vector<2x8x32xf32>
    %cst_79 = arith.constant dense<0.000000e+00> : vector<2x32xf32>
    %192 = vector.multi_reduction <add>, %191, %cst_79 [1] : vector<2x8x32xf32> to vector<2x32xf32>
    %c0_80 = arith.constant 0 : index
    %c0_81 = arith.constant 0 : index
    %193 = vector.load %arg2[%c0_80, %c0_81] : memref<2x8xf32, #tpu.memory_space<vmem>>, vector<2x8xf32>
    %cst_82 = arith.constant dense<0xFF800000> : vector<2xf32>
    %194 = vector.multi_reduction <maximumf>, %193, %cst_82 [1] : vector<2x8xf32> to vector<2xf32>
    %195 = vector.shape_cast %194 : vector<2xf32> to vector<2x1xf32>
    %196 = vector.broadcast %195 : vector<2x1xf32> to vector<2x8xf32>
    %197 = arith.subf %193, %196 : vector<2x8xf32>
    %198 = math.exp %197 : vector<2x8xf32>
    %cst_83 = arith.constant dense<0.000000e+00> : vector<2xf32>
    %199 = vector.multi_reduction <add>, %198, %cst_83 [1] : vector<2x8xf32> to vector<2xf32>
    %200 = vector.shape_cast %199 : vector<2xf32> to vector<2x1xf32>
    %201 = tpu.reciprocal %200 {approx = true} : vector<2x1xf32> -> vector<2x1xf32>
    %202 = vector.broadcast %201 : vector<2x1xf32> to vector<2x8xf32>
    %203 = arith.mulf %198, %202 : vector<2x8xf32>
    %c6 = arith.constant 6 : index
    %c0_84 = arith.constant 0 : index
    %c0_85 = arith.constant 0 : index
    %204 = vector.load %arg5[%c6, %c0_84, %c0_85] : memref<7x8x32xf32, #tpu.memory_space<vmem>>, vector<1x8x32xf32>
    %205 = vector.shape_cast %204 : vector<1x8x32xf32> to vector<8x32xf32>
    %cst_86 = arith.constant dense<0.000000e+00> : vector<2x32xf32>
    %206 = tpu.matmul %203, %205, %cst_86 {dimension_numbers = #tpu.dot_dimension_numbers<[1], [0], [0], [1], [0, 0, 1, 1], [], []>} : vector<2x8xf32>, vector<8x32xf32>, vector<2x32xf32> -> vector<2x32xf32>
    %207 = arith.addf %192, %206 : vector<2x32xf32>
    %c0_87 = arith.constant 0 : index
    %c0_88 = arith.constant 0 : index
    %208 = vector.load %arg6[%c0_87, %c0_88] : memref<36x32xf32, #tpu.memory_space<vmem>>, vector<32x32xf32>
    %c32 = arith.constant 32 : index
    %c0_89 = arith.constant 0 : index
    %209 = vector.load %arg6[%c32, %c0_89] : memref<36x32xf32, #tpu.memory_space<vmem>>, vector<1x32xf32>
    %210 = vector.shape_cast %209 : vector<1x32xf32> to vector<32xf32>
    %c33 = arith.constant 33 : index
    %c0_90 = arith.constant 0 : index
    %211 = vector.load %arg6[%c33, %c0_90] : memref<36x32xf32, #tpu.memory_space<vmem>>, vector<1x32xf32>
    %212 = vector.shape_cast %211 : vector<1x32xf32> to vector<32xf32>
    %c34 = arith.constant 34 : index
    %c0_91 = arith.constant 0 : index
    %213 = vector.load %arg6[%c34, %c0_91] : memref<36x32xf32, #tpu.memory_space<vmem>>, vector<1x32xf32>
    %214 = vector.shape_cast %213 : vector<1x32xf32> to vector<32xf32>
    %c35 = arith.constant 35 : index
    %c0_92 = arith.constant 0 : index
    %215 = vector.load %arg6[%c35, %c0_92] : memref<36x32xf32, #tpu.memory_space<vmem>>, vector<1x1xf32>
    %216 = vector.shape_cast %215 : vector<1x1xf32> to vector<1xf32>
    %217 = vector.shape_cast %210 : vector<32xf32> to vector<1x32xf32>
    %218 = vector.broadcast %217 : vector<1x32xf32> to vector<2x32xf32>
    %219 = arith.addf %207, %218 : vector<2x32xf32>
    %cst_93 = arith.constant 0.000000e+00 : f32
    %220 = vector.broadcast %cst_93 : f32 to vector<2x32xf32>
    %221 = arith.maximumf %219, %220 : vector<2x32xf32>
    %cst_94 = arith.constant dense<0.000000e+00> : vector<2x32xf32>
    %222 = tpu.matmul %221, %208, %cst_94 {dimension_numbers = #tpu.dot_dimension_numbers<[1], [0], [0], [1], [0, 0, 1, 1], [], []>} : vector<2x32xf32>, vector<32x32xf32>, vector<2x32xf32> -> vector<2x32xf32>
    %223 = vector.shape_cast %212 : vector<32xf32> to vector<1x32xf32>
    %224 = vector.broadcast %223 : vector<1x32xf32> to vector<2x32xf32>
    %225 = arith.addf %222, %224 : vector<2x32xf32>
    %cst_95 = arith.constant 0.000000e+00 : f32
    %226 = vector.broadcast %cst_95 : f32 to vector<2x32xf32>
    %227 = arith.maximumf %225, %226 : vector<2x32xf32>
    %228 = vector.shape_cast %214 : vector<32xf32> to vector<1x32xf32>
    %229 = vector.broadcast %228 : vector<1x32xf32> to vector<2x32xf32>
    %230 = arith.mulf %227, %229 : vector<2x32xf32>
    %cst_96 = arith.constant dense<0.000000e+00> : vector<2xf32>
    %231 = vector.multi_reduction <add>, %230, %cst_96 [1] : vector<2x32xf32> to vector<2xf32>
    %232 = vector.shape_cast %231 : vector<2xf32> to vector<2x1xf32>
    %233 = vector.shape_cast %216 : vector<1xf32> to vector<1x1xf32>
    %234 = vector.broadcast %233 : vector<1x1xf32> to vector<2x1xf32>
    %235 = arith.addf %232, %234 : vector<2x1xf32>
    %c0_97 = arith.constant 0 : index
    %c0_98 = arith.constant 0 : index
    %236 = vector.load %arg7[%c0_97, %c0_98] : memref<2x1xf32, #tpu.memory_space<vmem>>, vector<2x1xf32>
    tpu.vector_store %arg7[%c0_97, %c0_98], %235 {strides = array<i32>} : memref<2x1xf32, #tpu.memory_space<vmem>>, vector<2x1xf32>,
    return
  }
}

</mosaic_0001>

<llo_original>
// kernel: tpu_custom_call.1
$region0: #{tpu_custom_call.1}
  #allocation0 [shape = 'u32[]', space=smem, size = 0x4, offset = 0x4, fixed_abs, tag = 'smem constant byte address 0x4 - core index']
  #allocation1 [shape = 'u32[144,128]{1,0:T(1,128)}', space=vmem, size = 0x12000, scoped, tag = 'internal scratch']
  %s0 = inlined_call_operand.vmem [shape: bf16[2,8,32], index: 0, kind: input, shape index: {}]
  %s1 = inlined_call_operand.vmem [shape: bf16[2,16,32], index: 1, kind: input, shape index: {}]
  %s2 = inlined_call_operand.vmem [shape: f32[2,8], index: 2, kind: input, shape index: {}]
  %s3 = inlined_call_operand.hbm [shape: f32[6,16,64], index: 3, kind: input, shape index: {}]
  %s4 = inlined_call_operand.vmem [shape: f32[3,64], index: 4, kind: input, shape index: {}]
  %s5 = inlined_call_operand.vmem [shape: f32[7,8,32], index: 5, kind: input, shape index: {}]
  %s6 = inlined_call_operand.vmem [shape: f32[36,32], index: 6, kind: input, shape index: {}]
  %s7 = inlined_call_operand.vmem [shape: f32[2,1], index: 7, kind: output, shape index: {}]
  %s8 = sld [smem:[#allocation0]]
  $region42: #{tpu_custom_call.1} parent=0
    _
  %s10 = ssub.s32 1, %s8
  %s11 = scalar_select 0, %s10, %s8
  $region1: #{tpu_custom_call.1} parent=0
    #allocation2 [shape = 'u8[49152]{0}', space=vmem, size = 0xc000, scoped, tag = 'input window, operand 3, single buffered']
    #allocation3 [shape = 's32[1]{0}', space=sflag, size = 0x4, scoped, tag = 'scoped memory for tpu_custom_call.1']
    %12 = vsyncpa [#allocation3], 0
    // Predicated region
    $region2: #{tpu_custom_call.1} parent=1 // pred_check
      _
    $region3: #{tpu_custom_call.1} parent=1 // pred_check_branch
      %14 = sbr.rel (0) target = $region5
    $region4: #{tpu_custom_call.1} parent=1 // pred_region
      _
    $region5: #{tpu_custom_call.1} parent=1 // pred_fallthru
      _
    // Predicated region
    $region6: #{tpu_custom_call.1} parent=1 // pred_check
      _
    $region7: #{tpu_custom_call.1} parent=1 // pred_check_branch
      %16 = sbr.rel (0) target = $region9
    $region8: #{tpu_custom_call.1} parent=1 // pred_region
      _
    $region9: #{tpu_custom_call.1} parent=1 // pred_fallthru
      _
    // Predicated region
    $region10: #{tpu_custom_call.1} parent=1 // pred_check
      _
    $region11: #{tpu_custom_call.1} parent=1 // pred_check_branch
      %18 = sbr.rel (0) target = $region13
    $region12: #{tpu_custom_call.1} parent=1 // pred_region
      _
    $region13: #{tpu_custom_call.1} parent=1 // pred_fallthru
      _
    // Predicated region
    $region14: #{tpu_custom_call.1} parent=1 // pred_check
      _
    $region15: #{tpu_custom_call.1} parent=1 // pred_check_branch
      %20 = sbr.rel (0) target = $region17
    $region16: #{tpu_custom_call.1} parent=1 // pred_region
      %s22 = ssub.s32 1536, 1536
      %23 = vsyncadd [#allocation3], %s22
      %s24 = sshll.u32 [#allocation2], 4
      %s25 = int_to_ptr.vmem [resolvable:$true] %s24
      %30 = dma.hbm_to_vmem [thread:$0]  %s3, 1536, %s25, [#allocation3], 128, 128, 8
    $region17: #{tpu_custom_call.1} parent=1 // pred_fallthru
      _
    // Predicated region
    $region18: #{tpu_custom_call.1} parent=1 // pred_check
      _
    $region19: #{tpu_custom_call.1} parent=1 // pred_check_branch
      %32 = sbr.rel (0) target = $region21
    $region20: #{tpu_custom_call.1} parent=1 // pred_region
      _
    $region21: #{tpu_custom_call.1} parent=1 // pred_fallthru
      _
    // Predicated region
    $region22: #{tpu_custom_call.1} parent=1 // pred_check
      _
    $region23: #{tpu_custom_call.1} parent=1 // pred_check_branch
      %34 = sbr.rel (0) target = $region25
    $region24: #{tpu_custom_call.1} parent=1 // pred_region
      _
    $region25: #{tpu_custom_call.1} parent=1 // pred_fallthru
      _
    // Predicated region
    $region26: #{tpu_custom_call.1} parent=1 // pred_check
      _
    $region27: #{tpu_custom_call.1} parent=1 // pred_check_branch
      %36 = sbr.rel (0) target = $region29
    $region28: #{tpu_custom_call.1} parent=1 // pred_region
      _
    $region29: #{tpu_custom_call.1} parent=1 // pred_fallthru
      _
    // Predicated region
    $region30: #{tpu_custom_call.1} parent=1 // pred_check
      _
    $region31: #{tpu_custom_call.1} parent=1 // pred_check_branch
      %38 = sbr.rel (0) target = $region33
    $region32: #{tpu_custom_call.1} parent=1 // pred_region
      %39 = dma.done [#allocation3], 1536
    $region33: #{tpu_custom_call.1} parent=1 // pred_fallthru
      _
    %v41 = vld [vmem:[%s0] sm:$0xf]
    %v42 = vld [vmem:[%s0 + $0x4] sm:$0xf]
    %v43 = vld [vmem:[%s1] sm:$0xf]
    %v44 = vld [vmem:[%s1 + $0x4] sm:$0xf]
    %v45 = vld [vmem:[%s1 + $0x8] sm:$0xf]
    %v46 = vld [vmem:[%s1 + $0xc] sm:$0xf]
    %v47 = vunpack.c.l.bf16 %v41
    %v48 = vunpack.c.l.bf16 %v42
    %v49 = vunpack.c.l.bf16 %v43
    %v50 = vunpack.c.l.bf16 %v44
    %v51 = vunpack.c.l.bf16 %v45
    %v52 = vunpack.c.l.bf16 %v46
    %v53 = vmul.f32 %v47, %v47
    %v54 = vmul.f32 %v48, %v48
    %vm55 = vcmask 261120
    %v56 = vsel %vm55, %v53, 0.0
    %57 = vadd.xlane.f32.xlu0 %v56
    %v58 = vpop.xlane.xlu0 %57
    %v59 = vsel %vm55, %v54, 0.0
    %60 = vadd.xlane.f32.xlu0 %v59
    %v61 = vpop.xlane.xlu0 %60
    %v62 = vadd.f32 %v58, 1e-12
    %v63 = vadd.f32 %v61, 1e-12
    %v64 = vrsqrt.pop %v62
    %v65 = vrsqrt.pop %v63
    %v66 = vmul.f32 %v49, %v49
    %v67 = vmul.f32 %v50, %v50
    %v68 = vmul.f32 %v51, %v51
    %v69 = vmul.f32 %v52, %v52
    %v70 = vsel %vm55, %v66, 0.0
    %71 = vadd.xlane.f32.xlu0 %v70
    %v72 = vpop.xlane.xlu0 %71
    %v73 = vsel %vm55, %v67, 0.0
    %74 = vadd.xlane.f32.xlu0 %v73
    %v75 = vpop.xlane.xlu0 %74
    %v76 = vsel %vm55, %v68, 0.0
    %77 = vadd.xlane.f32.xlu0 %v76
    %v78 = vpop.xlane.xlu0 %77
    %v79 = vsel %vm55, %v69, 0.0
    %80 = vadd.xlane.f32.xlu0 %v79
    %v81 = vpop.xlane.xlu0 %80
    %v82 = vadd.f32 %v72, 1e-12
    %v83 = vadd.f32 %v75, 1e-12
    %v84 = vadd.f32 %v78, 1e-12
    %v85 = vadd.f32 %v81, 1e-12
    %v86 = vrsqrt.pop %v82
    %v87 = vrsqrt.pop %v83
    %v88 = vrsqrt.pop %v84
    %v89 = vrsqrt.pop %v85
    %v90 = vmul.f32 %v49, %v86
    %v91 = vmul.f32 %v50, %v87
    %v92 = vmul.f32 %v51, %v88
    %v93 = vmul.f32 %v52, %v89
    %v94 = vpack.c.bf16 %v91, %v90
    %v95 = vpack.c.bf16 %v93, %v92
    %v97 = vsel %vm55, %v41, 0
    %v100 = vsel %vm55, %v94, 0
    %102 = vmatprep.subr.bf16.mxu0 0
    %103 = vmatpush1.bf16.xpose.msra.mxu0 %v100
    %104 = vmatprep.subr.bf16.mxu0 0
    %105 = vmatpush1.bf16.xpose.msra.mxu0 0
    %106 = vmatprep.subr.bf16.mxu0 0
    %107 = vmatpush1.bf16.xpose.msra.mxu0 0
    %108 = vmatprep.subr.bf16.mxu0 0
    %109 = vmatpush1.bf16.xpose.msra.mxu0 0
    %110 = vmatprep.subr.bf16.mxu0 0
    %111 = vmatpush1.bf16.xpose.msra.mxu0 0
    %112 = vmatprep.subr.bf16.mxu0 0
    %113 = vmatpush1.bf16.xpose.msra.mxu0 0
    %114 = vmatprep.subr.bf16.mxu0 0
    %115 = vmatpush1.bf16.xpose.msra.mxu0 0
    %116 = vmatprep.subr.bf16.mxu0 0
    %117 = vmatpush1.bf16.xpose.msra.mxu0 0
    %118 = vmatprep.subr.bf16.mxu0 0
    %119 = vmatpush1.bf16.xpose.msra.mxu0 0
    %120 = vmatprep.subr.bf16.mxu0 0
    %121 = vmatpush1.bf16.xpose.msra.mxu0 0
    %122 = vmatprep.subr.bf16.mxu0 0
    %123 = vmatpush1.bf16.xpose.msra.mxu0 0
    %124 = vmatprep.subr.bf16.mxu0 0
    %125 = vmatpush1.bf16.xpose.msra.mxu0 0
    %126 = vmatprep.subr.bf16.mxu0 0
    %127 = vmatpush1.bf16.xpose.msra.mxu0 0
    %128 = vmatprep.subr.bf16.mxu0 0
    %129 = vmatpush1.bf16.xpose.msra.mxu0 0
    %130 = vmatprep.subr.bf16.mxu0 0
    %131 = vmatpush1.bf16.xpose.msra.mxu0 0
    %132 = vmatprep.subr.bf16.mxu0 0
    %133 = vmatpush1.bf16.xpose.msra.mxu0 0
    %134 = vmatprep.mubr.bf16.mxu0 0
    %135 = vmatmul.mubr.bf16.gmra.mrb[0].mxu0 %v97
    %v136 = vpop.f32.mrb[0].mxu0
    %v137 = vadd.f32 0.0, %v136
    %v138 = vpop.f32.mrb[0].mxu0
    %v139 = vpop.f32.mrb[0].mxu0
    %v140 = vpop.f32.mrb[0].mxu0
    %141 = vdwg.mxu0
    %v143 = vsel %vm55, %v42, 0
    %v146 = vsel %vm55, %v95, 0
    %148 = vmatprep.subr.bf16.mxu0 0
    %149 = vmatpush1.bf16.xpose.msra.mxu0 %v146
    %150 = vmatprep.subr.bf16.mxu0 0
    %151 = vmatpush1.bf16.xpose.msra.mxu0 0
    %152 = vmatprep.subr.bf16.mxu0 0
    %153 = vmatpush1.bf16.xpose.msra.mxu0 0
    %154 = vmatprep.subr.bf16.mxu0 0
    %155 = vmatpush1.bf16.xpose.msra.mxu0 0
    %156 = vmatprep.subr.bf16.mxu0 0
    %157 = vmatpush1.bf16.xpose.msra.mxu0 0
    %158 = vmatprep.subr.bf16.mxu0 0
    %159 = vmatpush1.bf16.xpose.msra.mxu0 0
    %160 = vmatprep.subr.bf16.mxu0 0
    %161 = vmatpush1.bf16.xpose.msra.mxu0 0
    %162 = vmatprep.subr.bf16.mxu0 0
    %163 = vmatpush1.bf16.xpose.msra.mxu0 0
    %164 = vmatprep.subr.bf16.mxu0 0
    %165 = vmatpush1.bf16.xpose.msra.mxu0 0
    %166 = vmatprep.subr.bf16.mxu0 0
    %167 = vmatpush1.bf16.xpose.msra.mxu0 0
    %168 = vmatprep.subr.bf16.mxu0 0
    %169 = vmatpush1.bf16.xpose.msra.mxu0 0
    %170 = vmatprep.subr.bf16.mxu0 0
    %171 = vmatpush1.bf16.xpose.msra.mxu0 0
    %172 = vmatprep.subr.bf16.mxu0 0
    %173 = vmatpush1.bf16.xpose.msra.mxu0 0
    %174 = vmatprep.subr.bf16.mxu0 0
    %175 = vmatpush1.bf16.xpose.msra.mxu0 0
    %176 = vmatprep.subr.bf16.mxu0 0
    %177 = vmatpush1.bf16.xpose.msra.mxu0 0
    %178 = vmatprep.subr.bf16.mxu0 0
    %179 = vmatpush1.bf16.xpose.msra.mxu0 0
    %180 = vmatprep.mubr.bf16.mxu0 0
    %181 = vmatmul.mubr.bf16.gmra.mrb[0].mxu0 %v143
    %v182 = vpop.f32.mrb[0].mxu0
    %v183 = vadd.f32 0.0, %v182
    %v184 = vpop.f32.mrb[0].mxu0
    %v185 = vpop.f32.mrb[0].mxu0
    %v186 = vpop.f32.mrb[0].mxu0
    %187 = vdwg.mxu0
    %v188 = vmul.f32 %v137, %v64
    %v189 = vmul.f32 %v183, %v65
    %v190 = vlaneseq
    %v191 = vshrl.u32 %v190, 7
    %v192 = vrot.slane %v188, 1
    %v193 = vrot.slane %v189, 1
    %vm194 = vcmp.lt.s32.totalorder %v191, 7
    %v195 = vsel %vm194, 1, 0
    %vm196 = vcmp.eq.s32.totalorder %v195, 1
    %v197 = vsel %vm196, %v192, 0.0
    %v198 = vsel %vm196, %v193, 0.0
    %v199 = vrot.slane %v188, 2
    %v200 = vrot.slane %v189, 2
    %vm201 = vcmp.lt.s32.totalorder %v191, 6
    %v202 = vsel %vm201, 1, 0
    %vm203 = vcmp.eq.s32.totalorder %v202, 1
    %v204 = vsel %vm203, %v199, 0.0
    %v205 = vsel %vm203, %v200, 0.0
    %v206 = vlaneseq
    %v207 = vand.u32 %v206, 127
    %v208 = vld [vmem:[#allocation2] sm:$0xff]
    %v209 = vld [vmem:[#allocation2 + $0x8] sm:$0xff]
    %v210 = vld [vmem:[%s4] sm:$0x1]
    %v211 = vlaneseq
    %v212 = vshrl.u32 %v211, 7
    %v213 = vsub.s32 0, %v212
    %v214 = vrot.slane %v210, %v213
    %vm215 = vcmask 130048
    %v217 = vsel %vm215, %v188, 0
    %219 = vmatprep.subr.mxu0 0.0
    %220 = vmatpush1.msra.mxu0 %v208
    %221 = vmatprep.subr.mxu0 0.0
    %222 = vmatpush1.msra.mxu0 %v209
    %223 = vmatprep.subr.mxu0 0.0
    %224 = vmatpush1.msra.mxu0 0.0
    %225 = vmatprep.subr.mxu0 0.0
    %226 = vmatpush1.msra.mxu0 0.0
    %227 = vmatprep.subr.mxu0 0.0
    %228 = vmatpush1.msra.mxu0 0.0
    %229 = vmatprep.subr.mxu0 0.0
    %230 = vmatpush1.msra.mxu0 0.0
    %231 = vmatprep.subr.mxu0 0.0
    %232 = vmatpush1.msra.mxu0 0.0
    %233 = vmatprep.subr.mxu0 0.0
    %234 = vmatpush1.msra.mxu0 0.0
    %235 = vmatprep.subr.mxu0 0.0
    %236 = vmatpush1.msra.mxu0 0.0
    %237 = vmatprep.subr.mxu0 0.0
    %238 = vmatpush1.msra.mxu0 0.0
    %239 = vmatprep.subr.mxu0 0.0
    %240 = vmatpush1.msra.mxu0 0.0
    %241 = vmatprep.subr.mxu0 0.0
    %242 = vmatpush1.msra.mxu0 0.0
    %243 = vmatprep.subr.mxu0 0.0
    %244 = vmatpush1.msra.mxu0 0.0
    %245 = vmatprep.subr.mxu0 0.0
    %246 = vmatpush1.msra.mxu0 0.0
    %247 = vmatprep.subr.mxu0 0.0
    %248 = vmatpush1.msra.mxu0 0.0
    %249 = vmatprep.subr.mxu0 0.0
    %250 = vmatpush1.msra.mxu0 0.0
    %251 = vmatprep.subr.mxu0 0.0
    %252 = vmatpush1.msra.mxu0 0.0
    %253 = vmatprep.subr.mxu0 0.0
    %254 = vmatpush1.msra.mxu0 0.0
    %255 = vmatprep.subr.mxu0 0.0
    %256 = vmatpush1.msra.mxu0 0.0
    %257 = vmatprep.subr.mxu0 0.0
    %258 = vmatpush1.msra.mxu0 0.0
    %259 = vmatprep.subr.mxu0 0.0
    %260 = vmatpush1.msra.mxu0 0.0
    %261 = vmatprep.subr.mxu0 0.0
    %262 = vmatpush1.msra.mxu0 0.0
    %263 = vmatprep.subr.mxu0 0.0
    %264 = vmatpush1.msra.mxu0 0.0
    %265 = vmatprep.subr.mxu0 0.0
    %266 = vmatpush1.msra.mxu0 0.0
    %267 = vmatprep.subr.mxu0 0.0
    %268 = vmatpush1.msra.mxu0 0.0
    %269 = vmatprep.subr.mxu0 0.0
    %270 = vmatpush1.msra.mxu0 0.0
    %271 = vmatprep.subr.mxu0 0.0
    %272 = vmatpush1.msra.mxu0 0.0
    %273 = vmatprep.subr.mxu0 0.0
    %274 = vmatpush1.msra.mxu0 0.0
    %275 = vmatprep.subr.mxu0 0.0
    %276 = vmatpush1.msra.mxu0 0.0
    %277 = vmatprep.subr.mxu0 0.0
    %278 = vmatpush1.msra.mxu0 0.0
    %279 = vmatprep.subr.mxu0 0.0
    %280 = vmatpush1.msra.mxu0 0.0
    %281 = vmatprep.subr.mxu0 0.0
    %282 = vmatpush1.msra.mxu0 0.0
    %283 = vmatprep.mubr.f32.mxu0 0.0
    %284 = vmatmul.mubr.f32.gmra.mrb[0].mxu0 %v217
    %v285 = vpop.f32.mrb[0].mxu0
    %v286 = vadd.f32 %v214, %v285
    %v287 = vpop.f32.mrb[0].mxu0
    %288 = vdwg.mxu0
    %v290 = vsel %vm215, %v189, 0
    %292 = vmatprep.subr.mxu0 0.0
    %293 = vmatpush1.msra.mxu0 %v208
    %294 = vmatprep.subr.mxu0 0.0
    %295 = vmatpush1.msra.mxu0 %v209
    %296 = vmatprep.subr.mxu0 0.0
    %297 = vmatpush1.msra.mxu0 0.0
    %298 = vmatprep.subr.mxu0 0.0
    %299 = vmatpush1.msra.mxu0 0.0
    %300 = vmatprep.subr.mxu0 0.0
    %301 = vmatpush1.msra.mxu0 0.0
    %302 = vmatprep.subr.mxu0 0.0
    %303 = vmatpush1.msra.mxu0 0.0
    %304 = vmatprep.subr.mxu0 0.0
    %305 = vmatpush1.msra.mxu0 0.0
    %306 = vmatprep.subr.mxu0 0.0
    %307 = vmatpush1.msra.mxu0 0.0
    %308 = vmatprep.subr.mxu0 0.0
    %309 = vmatpush1.msra.mxu0 0.0
    %310 = vmatprep.subr.mxu0 0.0
    %311 = vmatpush1.msra.mxu0 0.0
    %312 = vmatprep.subr.mxu0 0.0
    %313 = vmatpush1.msra.mxu0 0.0
    %314 = vmatprep.subr.mxu0 0.0
    %315 = vmatpush1.msra.mxu0 0.0
    %316 = vmatprep.subr.mxu0 0.0
    %317 = vmatpush1.msra.mxu0 0.0
    %318 = vmatprep.subr.mxu0 0.0
    %319 = vmatpush1.msra.mxu0 0.0
    %320 = vmatprep.subr.mxu0 0.0
    %321 = vmatpush1.msra.mxu0 0.0
    %322 = vmatprep.subr.mxu0 0.0
    %323 = vmatpush1.msra.mxu0 0.0
    %324 = vmatprep.subr.mxu0 0.0
    %325 = vmatpush1.msra.mxu0 0.0
    %326 = vmatprep.subr.mxu0 0.0
    %327 = vmatpush1.msra.mxu0 0.0
    %328 = vmatprep.subr.mxu0 0.0
    %329 = vmatpush1.msra.mxu0 0.0
    %330 = vmatprep.subr.mxu0 0.0
    %331 = vmatpush1.msra.mxu0 0.0
    %332 = vmatprep.subr.mxu0 0.0
    %333 = vmatpush1.msra.mxu0 0.0
    %334 = vmatprep.subr.mxu0 0.0
    %335 = vmatpush1.msra.mxu0 0.0
    %336 = vmatprep.subr.mxu0 0.0
    %337 = vmatpush1.msra.mxu0 0.0
    %338 = vmatprep.subr.mxu0 0.0
    %339 = vmatpush1.msra.mxu0 0.0
    %340 = vmatprep.subr.mxu0 0.0
    %341 = vmatpush1.msra.mxu0 0.0
    %342 = vmatprep.subr.mxu0 0.0
    %343 = vmatpush1.msra.mxu0 0.0
    %344 = vmatprep.subr.mxu0 0.0
    %345 = vmatpush1.msra.mxu0 0.0
    %346 = vmatprep.subr.mxu0 0.0
    %347 = vmatpush1.msra.mxu0 0.0
    %348 = vmatprep.subr.mxu0 0.0
    %349 = vmatpush1.msra.mxu0 0.0
    %350 = vmatprep.subr.mxu0 0.0
    %351 = vmatpush1.msra.mxu0 0.0
    %352 = vmatprep.subr.mxu0 0.0
    %353 = vmatpush1.msra.mxu0 0.0
    %354 = vmatprep.subr.mxu0 0.0
    %355 = vmatpush1.msra.mxu0 0.0
    %356 = vmatprep.mubr.f32.mxu0 0.0
    %357 = vmatmul.mubr.f32.gmra.mrb[0].mxu0 %v290
    %v358 = vpop.f32.mrb[0].mxu0
    %v359 = vadd.f32 %v214, %v358
    %v360 = vpop.f32.mrb[0].mxu0
    %361 = vdwg.mxu0
    %v362 = vmax.f32 %v286, 0.0
    %v363 = vmax.f32 %v359, 0.0
    %vm364 = vcmask 1048064
    %365 = vrot.lane.b32.xlu0 %v362, 64
    %v366 = vpop.permute.xlu0 %365
    %v367 = vsel %vm364, %v366, %v362
    %368 = vrot.lane.b32.xlu0 %v363, 64
    %v369 = vpop.permute.xlu0 %368
    %v370 = vsel %vm364, %v369, %v363
    %371 = vrot.lane.b32.xlu0 %v367, 64
    %v372 = vpop.permute.xlu0 %371
    %373 = vrot.lane.b32.xlu0 %v370, 64
    %v374 = vpop.permute.xlu0 %373
    %v375 = vsel %vm364, %v372, %v362
    %v376 = vsel %vm364, %v374, %v363
    %379 = vrot.lane.b32.xlu0 %v375, 80
    %v380 = vpop.permute.xlu0 %379
    %381 = vrot.lane.b32.xlu0 %v376, 80
    %v382 = vpop.permute.xlu0 %381
    %v385 = vmax.f32 %v362, %v380
    %v386 = vmax.f32 %v363, %v382
    %387 = vrot.lane.b32.xlu0 %v385, 64
    %v388 = vpop.permute.xlu0 %387
    %v389 = vsel %vm364, %v388, %v385
    %390 = vrot.lane.b32.xlu0 %v386, 64
    %v391 = vpop.permute.xlu0 %390
    %v392 = vsel %vm364, %v391, %v386
    %393 = vrot.lane.b32.xlu0 %v389, 64
    %v394 = vpop.permute.xlu0 %393
    %395 = vrot.lane.b32.xlu0 %v392, 64
    %v396 = vpop.permute.xlu0 %395
    %v397 = vsel %vm364, %v394, %v385
    %v398 = vsel %vm364, %v396, %v386
    %401 = vrot.lane.b32.xlu0 %v397, 96
    %v402 = vpop.permute.xlu0 %401
    %403 = vrot.lane.b32.xlu0 %v398, 96
    %v404 = vpop.permute.xlu0 %403
    %v407 = vmax.f32 %v385, %v402
    %v408 = vmax.f32 %v386, %v404
    %v409 = vsel %vm215, %v407, -inf
    %410 = vmax.xlane.f32.xlu0 %v409
    %v411 = vpop.xlane.xlu0 %410
    %v412 = vsel %vm215, %v408, -inf
    %413 = vmax.xlane.f32.xlu0 %v412
    %v414 = vpop.xlane.xlu0 %413
    %v415 = vld [vmem:[%s5] sm:$0xff]
    %v416 = vmul.f32 %v411, %v415
    %v417 = vmul.f32 %v414, %v415
    %v418 = vadd.f32 %v416, 0.0
    %v419 = vadd.f32 %v417, 0.0
    %vm420 = vcmp.eq.f32.partialorder %v407, %v411
    %vm421 = vcmp.eq.f32.partialorder %v408, %v414
    %v422 = vsel %vm420, %v207, 16
    %v423 = vsel %vm421, %v207, 16
    %v424 = vsel %vm215, %v422, 2147483647
    %v425 = vand.u32 %v424, 65535
    %v426 = vshra.s32 %v424, 16
    %v427 = vcvt.s32.f32 %v425
    %v428 = vcvt.s32.f32 %v426
    %429 = vmin.xlane.f32.xlu0 %v428
    %v430 = vpop.xlane.xlu0 %429
    %vm431 = vcmp.eq.f32.partialorder %v428, %v430
    %v432 = vsel %vm431, %v427, inf
    %433 = vmin.xlane.f32.xlu0 %v432
    %v434 = vpop.xlane.xlu0 %433
    %v435 = vcvt.f32.s32 %v434
    %v436 = vcvt.f32.s32 %v430
    %v437 = vshll.u32 %v436, 16
    %v438 = vadd.s32 %v437, %v435
    %v439 = vsel %vm215, %v423, 2147483647
    %v440 = vand.u32 %v439, 65535
    %v441 = vshra.s32 %v439, 16
    %v442 = vcvt.s32.f32 %v440
    %v443 = vcvt.s32.f32 %v441
    %444 = vmin.xlane.f32.xlu0 %v443
    %v445 = vpop.xlane.xlu0 %444
    %vm446 = vcmp.eq.f32.partialorder %v443, %v445
    %v447 = vsel %vm446, %v442, inf
    %448 = vmin.xlane.f32.xlu0 %v447
    %v449 = vpop.xlane.xlu0 %448
    %v450 = vcvt.f32.s32 %v449
    %v451 = vcvt.f32.s32 %v445
    %v452 = vshll.u32 %v451, 16
    %v453 = vadd.s32 %v452, %v450
    %vm454 = vcmp.eq.s32.totalorder %v207, %v438
    %vm455 = vcmp.eq.s32.totalorder %v207, %v453
    %v456 = vsel %vm454, -1.0, %v407
    %v457 = vsel %vm455, -1.0, %v408
    %v458 = vsel %vm215, %v456, -inf
    %459 = vmax.xlane.f32.xlu0 %v458
    %v460 = vpop.xlane.xlu0 %459
    %v461 = vsel %vm215, %v457, -inf
    %462 = vmax.xlane.f32.xlu0 %v461
    %v463 = vpop.xlane.xlu0 %462
    %s464 = scalar_lea.vmem %s5, 8
    %v465 = vld [vmem:[%s464] sm:$0xff]
    %v466 = vmul.f32 %v460, %v465
    %v467 = vmul.f32 %v463, %v465
    %v468 = vadd.f32 %v418, %v466
    %v469 = vadd.f32 %v419, %v467
    %s470 = scalar_lea.vmem [#allocation2], 16
    %v471 = vld [vmem:[%s470] sm:$0xff]
    %v472 = vld [vmem:[%s470 + $0x8] sm:$0xff]
    %s473 = scalar_lea.vmem [#allocation2], 32
    %v474 = vld [vmem:[%s473] sm:$0xff]
    %v475 = vld [vmem:[%s473 + $0x8] sm:$0xff]
    %v477 = vsel %vm215, %v197, 0
    %479 = vmatprep.subr.mxu0 0.0
    %480 = vmatpush1.msra.mxu0 %v474
    %481 = vmatprep.subr.mxu0 0.0
    %482 = vmatpush1.msra.mxu0 %v475
    %483 = vmatprep.subr.mxu0 0.0
    %484 = vmatpush1.msra.mxu0 0.0
    %485 = vmatprep.subr.mxu0 0.0
    %486 = vmatpush1.msra.mxu0 0.0
    %487 = vmatprep.subr.mxu0 0.0
    %488 = vmatpush1.msra.mxu0 0.0
    %489 = vmatprep.subr.mxu0 0.0
    %490 = vmatpush1.msra.mxu0 0.0
    %491 = vmatprep.subr.mxu0 0.0
    %492 = vmatpush1.msra.mxu0 0.0
    %493 = vmatprep.subr.mxu0 0.0
    %494 = vmatpush1.msra.mxu0 0.0
    %495 = vmatprep.subr.mxu0 0.0
    %496 = vmatpush1.msra.mxu0 0.0
    %497 = vmatprep.subr.mxu0 0.0
    %498 = vmatpush1.msra.mxu0 0.0
    %499 = vmatprep.subr.mxu0 0.0
    %500 = vmatpush1.msra.mxu0 0.0
    %501 = vmatprep.subr.mxu0 0.0
    %502 = vmatpush1.msra.mxu0 0.0
    %503 = vmatprep.subr.mxu0 0.0
    %504 = vmatpush1.msra.mxu0 0.0
    %505 = vmatprep.subr.mxu0 0.0
    %506 = vmatpush1.msra.mxu0 0.0
    %507 = vmatprep.subr.mxu0 0.0
    %508 = vmatpush1.msra.mxu0 0.0
    %509 = vmatprep.subr.mxu0 0.0
    %510 = vmatpush1.msra.mxu0 0.0
    %511 = vmatprep.subr.mxu0 0.0
    %512 = vmatpush1.msra.mxu0 0.0
    %513 = vmatprep.subr.mxu0 0.0
    %514 = vmatpush1.msra.mxu0 0.0
    %515 = vmatprep.subr.mxu0 0.0
    %516 = vmatpush1.msra.mxu0 0.0
    %517 = vmatprep.subr.mxu0 0.0
    %518 = vmatpush1.msra.mxu0 0.0
    %519 = vmatprep.subr.mxu0 0.0
    %520 = vmatpush1.msra.mxu0 0.0
    %521 = vmatprep.subr.mxu0 0.0
    %522 = vmatpush1.msra.mxu0 0.0
    %523 = vmatprep.subr.mxu0 0.0
    %524 = vmatpush1.msra.mxu0 0.0
    %525 = vmatprep.subr.mxu0 0.0
    %526 = vmatpush1.msra.mxu0 0.0
    %527 = vmatprep.subr.mxu0 0.0
    %528 = vmatpush1.msra.mxu0 0.0
    %529 = vmatprep.subr.mxu0 0.0
    %530 = vmatpush1.msra.mxu0 0.0
    %531 = vmatprep.subr.mxu0 0.0
    %532 = vmatpush1.msra.mxu0 0.0
    %533 = vmatprep.subr.mxu0 0.0
    %534 = vmatpush1.msra.mxu0 0.0
    %535 = vmatprep.subr.mxu0 0.0
    %536 = vmatpush1.msra.mxu0 0.0
    %537 = vmatprep.subr.mxu0 0.0
    %538 = vmatpush1.msra.mxu0 0.0
    %539 = vmatprep.subr.mxu0 0.0
    %540 = vmatpush1.msra.mxu0 0.0
    %541 = vmatprep.subr.mxu0 0.0
    %542 = vmatpush1.msra.mxu0 0.0
    %543 = vmatprep.mubr.f32.mxu0 0.0
    %544 = vmatmul.mubr.f32.gmra.mrb[0].mxu0 %v477
    %v545 = vpop.f32.mrb[0].mxu0
    %v546 = vadd.f32 0.0, %v545
    %v547 = vpop.f32.mrb[0].mxu0
    %548 = vdwg.mxu0
    %v550 = vsel %vm215, %v198, 0
    %552 = vmatprep.subr.mxu0 0.0
    %553 = vmatpush1.msra.mxu0 %v474
    %554 = vmatprep.subr.mxu0 0.0
    %555 = vmatpush1.msra.mxu0 %v475
    %556 = vmatprep.subr.mxu0 0.0
    %557 = vmatpush1.msra.mxu0 0.0
    %558 = vmatprep.subr.mxu0 0.0
    %559 = vmatpush1.msra.mxu0 0.0
    %560 = vmatprep.subr.mxu0 0.0
    %561 = vmatpush1.msra.mxu0 0.0
    %562 = vmatprep.subr.mxu0 0.0
    %563 = vmatpush1.msra.mxu0 0.0
    %564 = vmatprep.subr.mxu0 0.0
    %565 = vmatpush1.msra.mxu0 0.0
    %566 = vmatprep.subr.mxu0 0.0
    %567 = vmatpush1.msra.mxu0 0.0
    %568 = vmatprep.subr.mxu0 0.0
    %569 = vmatpush1.msra.mxu0 0.0
    %570 = vmatprep.subr.mxu0 0.0
    %571 = vmatpush1.msra.mxu0 0.0
    %572 = vmatprep.subr.mxu0 0.0
    %573 = vmatpush1.msra.mxu0 0.0
    %574 = vmatprep.subr.mxu0 0.0
    %575 = vmatpush1.msra.mxu0 0.0
    %576 = vmatprep.subr.mxu0 0.0
    %577 = vmatpush1.msra.mxu0 0.0
    %578 = vmatprep.subr.mxu0 0.0
    %579 = vmatpush1.msra.mxu0 0.0
    %580 = vmatprep.subr.mxu0 0.0
    %581 = vmatpush1.msra.mxu0 0.0
    %582 = vmatprep.subr.mxu0 0.0
    %583 = vmatpush1.msra.mxu0 0.0
    %584 = vmatprep.subr.mxu0 0.0
    %585 = vmatpush1.msra.mxu0 0.0
    %586 = vmatprep.subr.mxu0 0.0
    %587 = vmatpush1.msra.mxu0 0.0
    %588 = vmatprep.subr.mxu0 0.0
    %589 = vmatpush1.msra.mxu0 0.0
    %590 = vmatprep.subr.mxu0 0.0
    %591 = vmatpush1.msra.mxu0 0.0
    %592 = vmatprep.subr.mxu0 0.0
    %593 = vmatpush1.msra.mxu0 0.0
    %594 = vmatprep.subr.mxu0 0.0
    %595 = vmatpush1.msra.mxu0 0.0
    %596 = vmatprep.subr.mxu0 0.0
    %597 = vmatpush1.msra.mxu0 0.0
    %598 = vmatprep.subr.mxu0 0.0
    %599 = vmatpush1.msra.mxu0 0.0
    %600 = vmatprep.subr.mxu0 0.0
    %601 = vmatpush1.msra.mxu0 0.0
    %602 = vmatprep.subr.mxu0 0.0
    %603 = vmatpush1.msra.mxu0 0.0
    %604 = vmatprep.subr.mxu0 0.0
    %605 = vmatpush1.msra.mxu0 0.0
    %606 = vmatprep.subr.mxu0 0.0
    %607 = vmatpush1.msra.mxu0 0.0
    %608 = vmatprep.subr.mxu0 0.0
    %609 = vmatpush1.msra.mxu0 0.0
    %610 = vmatprep.subr.mxu0 0.0
    %611 = vmatpush1.msra.mxu0 0.0
    %612 = vmatprep.subr.mxu0 0.0
    %613 = vmatpush1.msra.mxu0 0.0
    %614 = vmatprep.subr.mxu0 0.0
    %615 = vmatpush1.msra.mxu0 0.0
    %616 = vmatprep.mubr.f32.mxu0 0.0
    %617 = vmatmul.mubr.f32.gmra.mrb[0].mxu0 %v550
    %v618 = vpop.f32.mrb[0].mxu0
    %v619 = vadd.f32 0.0, %v618
    %v620 = vpop.f32.mrb[0].mxu0
    %621 = vdwg.mxu0
    %622 = vmatprep.subr.mxu0 0.0
    %623 = vmatpush1.msra.mxu0 %v471
    %624 = vmatprep.subr.mxu0 0.0
    %625 = vmatpush1.msra.mxu0 %v472
    %626 = vmatprep.subr.mxu0 0.0
    %627 = vmatpush1.msra.mxu0 0.0
    %628 = vmatprep.subr.mxu0 0.0
    %629 = vmatpush1.msra.mxu0 0.0
    %630 = vmatprep.subr.mxu0 0.0
    %631 = vmatpush1.msra.mxu0 0.0
    %632 = vmatprep.subr.mxu0 0.0
    %633 = vmatpush1.msra.mxu0 0.0
    %634 = vmatprep.subr.mxu0 0.0
    %635 = vmatpush1.msra.mxu0 0.0
    %636 = vmatprep.subr.mxu0 0.0
    %637 = vmatpush1.msra.mxu0 0.0
    %638 = vmatprep.subr.mxu0 0.0
    %639 = vmatpush1.msra.mxu0 0.0
    %640 = vmatprep.subr.mxu0 0.0
    %641 = vmatpush1.msra.mxu0 0.0
    %642 = vmatprep.subr.mxu0 0.0
    %643 = vmatpush1.msra.mxu0 0.0
    %644 = vmatprep.subr.mxu0 0.0
    %645 = vmatpush1.msra.mxu0 0.0
    %646 = vmatprep.subr.mxu0 0.0
    %647 = vmatpush1.msra.mxu0 0.0
    %648 = vmatprep.subr.mxu0 0.0
    %649 = vmatpush1.msra.mxu0 0.0
    %650 = vmatprep.subr.mxu0 0.0
    %651 = vmatpush1.msra.mxu0 0.0
    %652 = vmatprep.subr.mxu0 0.0
    %653 = vmatpush1.msra.mxu0 0.0
    %654 = vmatprep.subr.mxu0 0.0
    %655 = vmatpush1.msra.mxu0 0.0
    %656 = vmatprep.subr.mxu0 0.0
    %657 = vmatpush1.msra.mxu0 0.0
    %658 = vmatprep.subr.mxu0 0.0
    %659 = vmatpush1.msra.mxu0 0.0
    %660 = vmatprep.subr.mxu0 0.0
    %661 = vmatpush1.msra.mxu0 0.0
    %662 = vmatprep.subr.mxu0 0.0
    %663 = vmatpush1.msra.mxu0 0.0
    %664 = vmatprep.subr.mxu0 0.0
    %665 = vmatpush1.msra.mxu0 0.0
    %666 = vmatprep.subr.mxu0 0.0
    %667 = vmatpush1.msra.mxu0 0.0
    %668 = vmatprep.subr.mxu0 0.0
    %669 = vmatpush1.msra.mxu0 0.0
    %670 = vmatprep.subr.mxu0 0.0
    %671 = vmatpush1.msra.mxu0 0.0
    %672 = vmatprep.subr.mxu0 0.0
    %673 = vmatpush1.msra.mxu0 0.0
    %674 = vmatprep.subr.mxu0 0.0
    %675 = vmatpush1.msra.mxu0 0.0
    %676 = vmatprep.subr.mxu0 0.0
    %677 = vmatpush1.msra.mxu0 0.0
    %678 = vmatprep.subr.mxu0 0.0
    %679 = vmatpush1.msra.mxu0 0.0
    %680 = vmatprep.subr.mxu0 0.0
    %681 = vmatpush1.msra.mxu0 0.0
    %682 = vmatprep.subr.mxu0 0.0
    %683 = vmatpush1.msra.mxu0 0.0
    %684 = vmatprep.subr.mxu0 0.0
    %685 = vmatpush1.msra.mxu0 0.0
    %686 = vmatprep.mubr.f32.mxu0 0.0
    %687 = vmatmul.mubr.f32.gmra.mrb[0].mxu0 %v217
    %v688 = vpop.f32.mrb[0].mxu0
    %v689 = vadd.f32 %v546, %v688
    %v690 = vpop.f32.mrb[0].mxu0
    %691 = vdwg.mxu0
    %692 = vmatprep.subr.mxu0 0.0
    %693 = vmatpush1.msra.mxu0 %v471
    %694 = vmatprep.subr.mxu0 0.0
    %695 = vmatpush1.msra.mxu0 %v472
    %696 = vmatprep.subr.mxu0 0.0
    %697 = vmatpush1.msra.mxu0 0.0
    %698 = vmatprep.subr.mxu0 0.0
    %699 = vmatpush1.msra.mxu0 0.0
    %700 = vmatprep.subr.mxu0 0.0
    %701 = vmatpush1.msra.mxu0 0.0
    %702 = vmatprep.subr.mxu0 0.0
    %703 = vmatpush1.msra.mxu0 0.0
    %704 = vmatprep.subr.mxu0 0.0
    %705 = vmatpush1.msra.mxu0 0.0
    %706 = vmatprep.subr.mxu0 0.0
    %707 = vmatpush1.msra.mxu0 0.0
    %708 = vmatprep.subr.mxu0 0.0
    %709 = vmatpush1.msra.mxu0 0.0
    %710 = vmatprep.subr.mxu0 0.0
    %711 = vmatpush1.msra.mxu0 0.0
    %712 = vmatprep.subr.mxu0 0.0
    %713 = vmatpush1.msra.mxu0 0.0
    %714 = vmatprep.subr.mxu0 0.0
    %715 = vmatpush1.msra.mxu0 0.0
    %716 = vmatprep.subr.mxu0 0.0
    %717 = vmatpush1.msra.mxu0 0.0
    %718 = vmatprep.subr.mxu0 0.0
    %719 = vmatpush1.msra.mxu0 0.0
    %720 = vmatprep.subr.mxu0 0.0
    %721 = vmatpush1.msra.mxu0 0.0
    %722 = vmatprep.subr.mxu0 0.0
    %723 = vmatpush1.msra.mxu0 0.0
    %724 = vmatprep.subr.mxu0 0.0
    %725 = vmatpush1.msra.mxu0 0.0
    %726 = vmatprep.subr.mxu0 0.0
    %727 = vmatpush1.msra.mxu0 0.0
    %728 = vmatprep.subr.mxu0 0.0
    %729 = vmatpush1.msra.mxu0 0.0
    %730 = vmatprep.subr.mxu0 0.0
    %731 = vmatpush1.msra.mxu0 0.0
    %732 = vmatprep.subr.mxu0 0.0
    %733 = vmatpush1.msra.mxu0 0.0
    %734 = vmatprep.subr.mxu0 0.0
    %735 = vmatpush1.msra.mxu0 0.0
    %736 = vmatprep.subr.mxu0 0.0
    %737 = vmatpush1.msra.mxu0 0.0
    %738 = vmatprep.subr.mxu0 0.0
    %739 = vmatpush1.msra.mxu0 0.0
    %740 = vmatprep.subr.mxu0 0.0
    %741 = vmatpush1.msra.mxu0 0.0
    %742 = vmatprep.subr.mxu0 0.0
    %743 = vmatpush1.msra.mxu0 0.0
    %744 = vmatprep.subr.mxu0 0.0
    %745 = vmatpush1.msra.mxu0 0.0
    %746 = vmatprep.subr.mxu0 0.0
    %747 = vmatpush1.msra.mxu0 0.0
    %748 = vmatprep.subr.mxu0 0.0
    %749 = vmatpush1.msra.mxu0 0.0
    %750 = vmatprep.subr.mxu0 0.0
    %751 = vmatpush1.msra.mxu0 0.0
    %752 = vmatprep.subr.mxu0 0.0
    %753 = vmatpush1.msra.mxu0 0.0
    %754 = vmatprep.subr.mxu0 0.0
    %755 = vmatpush1.msra.mxu0 0.0
    %756 = vmatprep.mubr.f32.mxu0 0.0
    %757 = vmatmul.mubr.f32.gmra.mrb[0].mxu0 %v290
    %v758 = vpop.f32.mrb[0].mxu0
    %v759 = vadd.f32 %v619, %v758
    %v760 = vpop.f32.mrb[0].mxu0
    %761 = vdwg.mxu0
    %v762 = vld [vmem:[%s4 + $0x1] sm:$0x1]
    %v763 = vlaneseq
    %v764 = vshrl.u32 %v763, 7
    %v765 = vsub.s32 0, %v764
    %v766 = vrot.slane %v762, %v765
    %v767 = vadd.f32 %v689, %v766
    %v768 = vadd.f32 %v759, %v766
    %v769 = vmax.f32 %v767, 0.0
    %v770 = vmax.f32 %v768, 0.0
    %771 = vrot.lane.b32.xlu0 %v769, 64
    %v772 = vpop.permute.xlu0 %771
    %v773 = vsel %vm364, %v772, %v769
    %774 = vrot.lane.b32.xlu0 %v770, 64
    %v775 = vpop.permute.xlu0 %774
    %v776 = vsel %vm364, %v775, %v770
    %777 = vrot.lane.b32.xlu0 %v773, 64
    %v778 = vpop.permute.xlu0 %777
    %779 = vrot.lane.b32.xlu0 %v776, 64
    %v780 = vpop.permute.xlu0 %779
    %v781 = vsel %vm364, %v778, %v769
    %v782 = vsel %vm364, %v780, %v770
    %785 = vrot.lane.b32.xlu0 %v781, 80
    %v786 = vpop.permute.xlu0 %785
    %787 = vrot.lane.b32.xlu0 %v782, 80
    %v788 = vpop.permute.xlu0 %787
    %v791 = vmax.f32 %v769, %v786
    %v792 = vmax.f32 %v770, %v788
    %793 = vrot.lane.b32.xlu0 %v791, 64
    %v794 = vpop.permute.xlu0 %793
    %v795 = vsel %vm364, %v794, %v791
    %796 = vrot.lane.b32.xlu0 %v792, 64
    %v797 = vpop.permute.xlu0 %796
    %v798 = vsel %vm364, %v797, %v792
    %799 = vrot.lane.b32.xlu0 %v795, 64
    %v800 = vpop.permute.xlu0 %799
    %801 = vrot.lane.b32.xlu0 %v798, 64
    %v802 = vpop.permute.xlu0 %801
    %v803 = vsel %vm364, %v800, %v791
    %v804 = vsel %vm364, %v802, %v792
    %807 = vrot.lane.b32.xlu0 %v803, 96
    %v808 = vpop.permute.xlu0 %807
    %809 = vrot.lane.b32.xlu0 %v804, 96
    %v810 = vpop.permute.xlu0 %809
    %v813 = vmax.f32 %v791, %v808
    %v814 = vmax.f32 %v792, %v810
    %v815 = vsel %vm215, %v813, -inf
    %816 = vmax.xlane.f32.xlu0 %v815
    %v817 = vpop.xlane.xlu0 %816
    %v818 = vsel %vm215, %v814, -inf
    %819 = vmax.xlane.f32.xlu0 %v818
    %v820 = vpop.xlane.xlu0 %819
    %s821 = scalar_lea.vmem %s5, 16
    %v822 = vld [vmem:[%s821] sm:$0xff]
    %v823 = vmul.f32 %v817, %v822
    %v824 = vmul.f32 %v820, %v822
    %v825 = vadd.f32 %v468, %v823
    %v826 = vadd.f32 %v469, %v824
    %vm827 = vcmp.eq.f32.partialorder %v813, %v817
    %vm828 = vcmp.eq.f32.partialorder %v814, %v820
    %v829 = vsel %vm827, %v207, 16
    %v830 = vsel %vm828, %v207, 16
    %v831 = vsel %vm215, %v829, 2147483647
    %v832 = vand.u32 %v831, 65535
    %v833 = vshra.s32 %v831, 16
    %v834 = vcvt.s32.f32 %v832
    %v835 = vcvt.s32.f32 %v833
    %836 = vmin.xlane.f32.xlu0 %v835
    %v837 = vpop.xlane.xlu0 %836
    %vm838 = vcmp.eq.f32.partialorder %v835, %v837
    %v839 = vsel %vm838, %v834, inf
    %840 = vmin.xlane.f32.xlu0 %v839
    %v841 = vpop.xlane.xlu0 %840
    %v842 = vcvt.f32.s32 %v841
    %v843 = vcvt.f32.s32 %v837
    %v844 = vshll.u32 %v843, 16
    %v845 = vadd.s32 %v844, %v842
    %v846 = vsel %vm215, %v830, 2147483647
    %v847 = vand.u32 %v846, 65535
    %v848 = vshra.s32 %v846, 16
    %v849 = vcvt.s32.f32 %v847
    %v850 = vcvt.s32.f32 %v848
    %851 = vmin.xlane.f32.xlu0 %v850
    %v852 = vpop.xlane.xlu0 %851
    %vm853 = vcmp.eq.f32.partialorder %v850, %v852
    %v854 = vsel %vm853, %v849, inf
    %855 = vmin.xlane.f32.xlu0 %v854
    %v856 = vpop.xlane.xlu0 %855
    %v857 = vcvt.f32.s32 %v856
    %v858 = vcvt.f32.s32 %v852
    %v859 = vshll.u32 %v858, 16
    %v860 = vadd.s32 %v859, %v857
    %vm861 = vcmp.eq.s32.totalorder %v207, %v845
    %vm862 = vcmp.eq.s32.totalorder %v207, %v860
    %v863 = vsel %vm861, -1.0, %v813
    %v864 = vsel %vm862, -1.0, %v814
    %v865 = vsel %vm215, %v863, -inf
    %866 = vmax.xlane.f32.xlu0 %v865
    %v867 = vpop.xlane.xlu0 %866
    %v868 = vsel %vm215, %v864, -inf
    %869 = vmax.xlane.f32.xlu0 %v868
    %v870 = vpop.xlane.xlu0 %869
    %s871 = scalar_lea.vmem %s5, 24
    %v872 = vld [vmem:[%s871] sm:$0xff]
    %v873 = vmul.f32 %v867, %v872
    %v874 = vmul.f32 %v870, %v872
    %v875 = vadd.f32 %v825, %v873
    %v876 = vadd.f32 %v826, %v874
    %s877 = scalar_lea.vmem [#allocation2], 48
    %v878 = vld [vmem:[%s877] sm:$0xff]
    %v879 = vld [vmem:[%s877 + $0x8] sm:$0xff]
    %s880 = scalar_lea.vmem [#allocation2], 64
    %v881 = vld [vmem:[%s880] sm:$0xff]
    %v882 = vld [vmem:[%s880 + $0x8] sm:$0xff]
    %883 = vmatprep.subr.mxu0 0.0
    %884 = vmatpush1.msra.mxu0 %v881
    %885 = vmatprep.subr.mxu0 0.0
    %886 = vmatpush1.msra.mxu0 %v882
    %887 = vmatprep.subr.mxu0 0.0
    %888 = vmatpush1.msra.mxu0 0.0
    %889 = vmatprep.subr.mxu0 0.0
    %890 = vmatpush1.msra.mxu0 0.0
    %891 = vmatprep.subr.mxu0 0.0
    %892 = vmatpush1.msra.mxu0 0.0
    %893 = vmatprep.subr.mxu0 0.0
    %894 = vmatpush1.msra.mxu0 0.0
    %895 = vmatprep.subr.mxu0 0.0
    %896 = vmatpush1.msra.mxu0 0.0
    %897 = vmatprep.subr.mxu0 0.0
    %898 = vmatpush1.msra.mxu0 0.0
    %899 = vmatprep.subr.mxu0 0.0
    %900 = vmatpush1.msra.mxu0 0.0
    %901 = vmatprep.subr.mxu0 0.0
    %902 = vmatpush1.msra.mxu0 0.0
    %903 = vmatprep.subr.mxu0 0.0
    %904 = vmatpush1.msra.mxu0 0.0
    %905 = vmatprep.subr.mxu0 0.0
    %906 = vmatpush1.msra.mxu0 0.0
    %907 = vmatprep.subr.mxu0 0.0
    %908 = vmatpush1.msra.mxu0 0.0
    %909 = vmatprep.subr.mxu0 0.0
    %910 = vmatpush1.msra.mxu0 0.0
    %911 = vmatprep.subr.mxu0 0.0
    %912 = vmatpush1.msra.mxu0 0.0
    %913 = vmatprep.subr.mxu0 0.0
    %914 = vmatpush1.msra.mxu0 0.0
    %915 = vmatprep.subr.mxu0 0.0
    %916 = vmatpush1.msra.mxu0 0.0
    %917 = vmatprep.subr.mxu0 0.0
    %918 = vmatpush1.msra.mxu0 0.0
    %919 = vmatprep.subr.mxu0 0.0
    %920 = vmatpush1.msra.mxu0 0.0
    %921 = vmatprep.subr.mxu0 0.0
    %922 = vmatpush1.msra.mxu0 0.0
    %923 = vmatprep.subr.mxu0 0.0
    %924 = vmatpush1.msra.mxu0 0.0
    %925 = vmatprep.subr.mxu0 0.0
    %926 = vmatpush1.msra.mxu0 0.0
    %927 = vmatprep.subr.mxu0 0.0
    %928 = vmatpush1.msra.mxu0 0.0
    %929 = vmatprep.subr.mxu0 0.0
    %930 = vmatpush1.msra.mxu0 0.0
    %931 = vmatprep.subr.mxu0 0.0
    %932 = vmatpush1.msra.mxu0 0.0
    %933 = vmatprep.subr.mxu0 0.0
    %934 = vmatpush1.msra.mxu0 0.0
    %935 = vmatprep.subr.mxu0 0.0
    %936 = vmatpush1.msra.mxu0 0.0
    %937 = vmatprep.subr.mxu0 0.0
    %938 = vmatpush1.msra.mxu0 0.0
    %939 = vmatprep.subr.mxu0 0.0
    %940 = vmatpush1.msra.mxu0 0.0
    %941 = vmatprep.subr.mxu0 0.0
    %942 = vmatpush1.msra.mxu0 0.0
    %943 = vmatprep.subr.mxu0 0.0
    %944 = vmatpush1.msra.mxu0 0.0
    %945 = vmatprep.subr.mxu0 0.0
    %946 = vmatpush1.msra.mxu0 0.0
    %947 = vmatprep.mubr.f32.mxu0 0.0
    %948 = vmatmul.mubr.f32.gmra.mrb[0].mxu0 %v477
    %v949 = vpop.f32.mrb[0].mxu0
    %v950 = vadd.f32 0.0, %v949
    %v951 = vpop.f32.mrb[0].mxu0
    %952 = vdwg.mxu0
    %953 = vmatprep.subr.mxu0 0.0
    %954 = vmatpush1.msra.mxu0 %v881
    %955 = vmatprep.subr.mxu0 0.0
    %956 = vmatpush1.msra.mxu0 %v882
    %957 = vmatprep.subr.mxu0 0.0
    %958 = vmatpush1.msra.mxu0 0.0
    %959 = vmatprep.subr.mxu0 0.0
    %960 = vmatpush1.msra.mxu0 0.0
    %961 = vmatprep.subr.mxu0 0.0
    %962 = vmatpush1.msra.mxu0 0.0
    %963 = vmatprep.subr.mxu0 0.0
    %964 = vmatpush1.msra.mxu0 0.0
    %965 = vmatprep.subr.mxu0 0.0
    %966 = vmatpush1.msra.mxu0 0.0
    %967 = vmatprep.subr.mxu0 0.0
    %968 = vmatpush1.msra.mxu0 0.0
    %969 = vmatprep.subr.mxu0 0.0
    %970 = vmatpush1.msra.mxu0 0.0
    %971 = vmatprep.subr.mxu0 0.0
    %972 = vmatpush1.msra.mxu0 0.0
    %973 = vmatprep.subr.mxu0 0.0
    %974 = vmatpush1.msra.mxu0 0.0
    %975 = vmatprep.subr.mxu0 0.0
    %976 = vmatpush1.msra.mxu0 0.0
    %977 = vmatprep.subr.mxu0 0.0
    %978 = vmatpush1.msra.mxu0 0.0
    %979 = vmatprep.subr.mxu0 0.0
    %980 = vmatpush1.msra.mxu0 0.0
    %981 = vmatprep.subr.mxu0 0.0
    %982 = vmatpush1.msra.mxu0 0.0
    %983 = vmatprep.subr.mxu0 0.0
    %984 = vmatpush1.msra.mxu0 0.0
    %985 = vmatprep.subr.mxu0 0.0
    %986 = vmatpush1.msra.mxu0 0.0
    %987 = vmatprep.subr.mxu0 0.0
    %988 = vmatpush1.msra.mxu0 0.0
    %989 = vmatprep.subr.mxu0 0.0
    %990 = vmatpush1.msra.mxu0 0.0
    %991 = vmatprep.subr.mxu0 0.0
    %992 = vmatpush1.msra.mxu0 0.0
    %993 = vmatprep.subr.mxu0 0.0
    %994 = vmatpush1.msra.mxu0 0.0
    %995 = vmatprep.subr.mxu0 0.0
    %996 = vmatpush1.msra.mxu0 0.0
    %997 = vmatprep.subr.mxu0 0.0
    %998 = vmatpush1.msra.mxu0 0.0
    %999 = vmatprep.subr.mxu0 0.0
    %1000 = vmatpush1.msra.mxu0 0.0
    %1001 = vmatprep.subr.mxu0 0.0
    %1002 = vmatpush1.msra.mxu0 0.0
    %1003 = vmatprep.subr.mxu0 0.0
    %1004 = vmatpush1.msra.mxu0 0.0
    %1005 = vmatprep.subr.mxu0 0.0
    %1006 = vmatpush1.msra.mxu0 0.0
    %1007 = vmatprep.subr.mxu0 0.0
    %1008 = vmatpush1.msra.mxu0 0.0
    %1009 = vmatprep.subr.mxu0 0.0
    %1010 = vmatpush1.msra.mxu0 0.0
    %1011 = vmatprep.subr.mxu0 0.0
    %1012 = vmatpush1.msra.mxu0 0.0
    %1013 = vmatprep.subr.mxu0 0.0
    %1014 = vmatpush1.msra.mxu0 0.0
    %1015 = vmatprep.subr.mxu0 0.0
    %1016 = vmatpush1.msra.mxu0 0.0
    %1017 = vmatprep.mubr.f32.mxu0 0.0
    %1018 = vmatmul.mubr.f32.gmra.mrb[0].mxu0 %v550
    %v1019 = vpop.f32.mrb[0].mxu0
    %v1020 = vadd.f32 0.0, %v1019
    %v1021 = vpop.f32.mrb[0].mxu0
    %1022 = vdwg.mxu0
    %1023 = vmatprep.subr.mxu0 0.0
    %1024 = vmatpush1.msra.mxu0 %v878
    %1025 = vmatprep.subr.mxu0 0.0
    %1026 = vmatpush1.msra.mxu0 %v879
    %1027 = vmatprep.subr.mxu0 0.0
    %1028 = vmatpush1.msra.mxu0 0.0
    %1029 = vmatprep.subr.mxu0 0.0
    %1030 = vmatpush1.msra.mxu0 0.0
    %1031 = vmatprep.subr.mxu0 0.0
    %1032 = vmatpush1.msra.mxu0 0.0
    %1033 = vmatprep.subr.mxu0 0.0
    %1034 = vmatpush1.msra.mxu0 0.0
    %1035 = vmatprep.subr.mxu0 0.0
    %1036 = vmatpush1.msra.mxu0 0.0
    %1037 = vmatprep.subr.mxu0 0.0
    %1038 = vmatpush1.msra.mxu0 0.0
    %1039 = vmatprep.subr.mxu0 0.0
    %1040 = vmatpush1.msra.mxu0 0.0
    %1041 = vmatprep.subr.mxu0 0.0
    %1042 = vmatpush1.msra.mxu0 0.0
    %1043 = vmatprep.subr.mxu0 0.0
    %1044 = vmatpush1.msra.mxu0 0.0
    %1045 = vmatprep.subr.mxu0 0.0
    %1046 = vmatpush1.msra.mxu0 0.0
    %1047 = vmatprep.subr.mxu0 0.0
    %1048 = vmatpush1.msra.mxu0 0.0
    %1049 = vmatprep.subr.mxu0 0.0
    %1050 = vmatpush1.msra.mxu0 0.0
    %1051 = vmatprep.subr.mxu0 0.0
    %1052 = vmatpush1.msra.mxu0 0.0
    %1053 = vmatprep.subr.mxu0 0.0
    %1054 = vmatpush1.msra.mxu0 0.0
    %1055 = vmatprep.subr.mxu0 0.0
    %1056 = vmatpush1.msra.mxu0 0.0
    %1057 = vmatprep.subr.mxu0 0.0
    %1058 = vmatpush1.msra.mxu0 0.0
    %1059 = vmatprep.subr.mxu0 0.0
    %1060 = vmatpush1.msra.mxu0 0.0
    %1061 = vmatprep.subr.mxu0 0.0
    %1062 = vmatpush1.msra.mxu0 0.0
    %1063 = vmatprep.subr.mxu0 0.0
    %1064 = vmatpush1.msra.mxu0 0.0
    %1065 = vmatprep.subr.mxu0 0.0
    %1066 = vmatpush1.msra.mxu0 0.0
    %1067 = vmatprep.subr.mxu0 0.0
    %1068 = vmatpush1.msra.mxu0 0.0
    %1069 = vmatprep.subr.mxu0 0.0
    %1070 = vmatpush1.msra.mxu0 0.0
    %1071 = vmatprep.subr.mxu0 0.0
    %1072 = vmatpush1.msra.mxu0 0.0
    %1073 = vmatprep.subr.mxu0 0.0
    %1074 = vmatpush1.msra.mxu0 0.0
    %1075 = vmatprep.subr.mxu0 0.0
    %1076 = vmatpush1.msra.mxu0 0.0
    %1077 = vmatprep.subr.mxu0 0.0
    %1078 = vmatpush1.msra.mxu0 0.0
    %1079 = vmatprep.subr.mxu0 0.0
    %1080 = vmatpush1.msra.mxu0 0.0
    %1081 = vmatprep.subr.mxu0 0.0
    %1082 = vmatpush1.msra.mxu0 0.0
    %1083 = vmatprep.subr.mxu0 0.0
    %1084 = vmatpush1.msra.mxu0 0.0
    %1085 = vmatprep.subr.mxu0 0.0
    %1086 = vmatpush1.msra.mxu0 0.0
    %1087 = vmatprep.mubr.f32.mxu0 0.0
    %1088 = vmatmul.mubr.f32.gmra.mrb[0].mxu0 %v217
    %v1089 = vpop.f32.mrb[0].mxu0
    %v1090 = vadd.f32 %v950, %v1089
    %v1091 = vpop.f32.mrb[0].mxu0
    %1092 = vdwg.mxu0
    %1093 = vmatprep.subr.mxu0 0.0
    %1094 = vmatpush1.msra.mxu0 %v878
    %1095 = vmatprep.subr.mxu0 0.0
    %1096 = vmatpush1.msra.mxu0 %v879
    %1097 = vmatprep.subr.mxu0 0.0
    %1098 = vmatpush1.msra.mxu0 0.0
    %1099 = vmatprep.subr.mxu0 0.0
    %1100 = vmatpush1.msra.mxu0 0.0
    %1101 = vmatprep.subr.mxu0 0.0
    %1102 = vmatpush1.msra.mxu0 0.0
    %1103 = vmatprep.subr.mxu0 0.0
    %1104 = vmatpush1.msra.mxu0 0.0
    %1105 = vmatprep.subr.mxu0 0.0
    %1106 = vmatpush1.msra.mxu0 0.0
    %1107 = vmatprep.subr.mxu0 0.0
    %1108 = vmatpush1.msra.mxu0 0.0
    %1109 = vmatprep.subr.mxu0 0.0
    %1110 = vmatpush1.msra.mxu0 0.0
    %1111 = vmatprep.subr.mxu0 0.0
    %1112 = vmatpush1.msra.mxu0 0.0
    %1113 = vmatprep.subr.mxu0 0.0
    %1114 = vmatpush1.msra.mxu0 0.0
    %1115 = vmatprep.subr.mxu0 0.0
    %1116 = vmatpush1.msra.mxu0 0.0
    %1117 = vmatprep.subr.mxu0 0.0
    %1118 = vmatpush1.msra.mxu0 0.0
    %1119 = vmatprep.subr.mxu0 0.0
    %1120 = vmatpush1.msra.mxu0 0.0
    %1121 = vmatprep.subr.mxu0 0.0
    %1122 = vmatpush1.msra.mxu0 0.0
    %1123 = vmatprep.subr.mxu0 0.0
    %1124 = vmatpush1.msra.mxu0 0.0
    %1125 = vmatprep.subr.mxu0 0.0
    %1126 = vmatpush1.msra.mxu0 0.0
    %1127 = vmatprep.subr.mxu0 0.0
    %1128 = vmatpush1.msra.mxu0 0.0
    %1129 = vmatprep.subr.mxu0 0.0
    %1130 = vmatpush1.msra.mxu0 0.0
    %1131 = vmatprep.subr.mxu0 0.0
    %1132 = vmatpush1.msra.mxu0 0.0
    %1133 = vmatprep.subr.mxu0 0.0
    %1134 = vmatpush1.msra.mxu0 0.0
    %1135 = vmatprep.subr.mxu0 0.0
    %1136 = vmatpush1.msra.mxu0 0.0
    %1137 = vmatprep.subr.mxu0 0.0
    %1138 = vmatpush1.msra.mxu0 0.0
    %1139 = vmatprep.subr.mxu0 0.0
    %1140 = vmatpush1.msra.mxu0 0.0
    %1141 = vmatprep.subr.mxu0 0.0
    %1142 = vmatpush1.msra.mxu0 0.0
    %1143 = vmatprep.subr.mxu0 0.0
    %1144 = vmatpush1.msra.mxu0 0.0
    %1145 = vmatprep.subr.mxu0 0.0
    %1146 = vmatpush1.msra.mxu0 0.0
    %1147 = vmatprep.subr.mxu0 0.0
    %1148 = vmatpush1.msra.mxu0 0.0
    %1149 = vmatprep.subr.mxu0 0.0
    %1150 = vmatpush1.msra.mxu0 0.0
    %1151 = vmatprep.subr.mxu0 0.0
    %1152 = vmatpush1.msra.mxu0 0.0
    %1153 = vmatprep.subr.mxu0 0.0
    %1154 = vmatpush1.msra.mxu0 0.0
    %1155 = vmatprep.subr.mxu0 0.0
    %1156 = vmatpush1.msra.mxu0 0.0
    %1157 = vmatprep.mubr.f32.mxu0 0.0
    %1158 = vmatmul.mubr.f32.gmra.mrb[0].mxu0 %v290
    %v1159 = vpop.f32.mrb[0].mxu0
    %v1160 = vadd.f32 %v1020, %v1159
    %v1161 = vpop.f32.mrb[0].mxu0
    %1162 = vdwg.mxu0
    %s1163 = scalar_lea.vmem [#allocation2], 80
    %v1164 = vld [vmem:[%s1163] sm:$0xff]
    %v1165 = vld [vmem:[%s1163 + $0x8] sm:$0xff]
    %v1167 = vsel %vm215, %v204, 0
    %1169 = vmatprep.subr.mxu0 0.0
    %1170 = vmatpush1.msra.mxu0 %v1164
    %1171 = vmatprep.subr.mxu0 0.0
    %1172 = vmatpush1.msra.mxu0 %v1165
    %1173 = vmatprep.subr.mxu0 0.0
    %1174 = vmatpush1.msra.mxu0 0.0
    %1175 = vmatprep.subr.mxu0 0.0
    %1176 = vmatpush1.msra.mxu0 0.0
    %1177 = vmatprep.subr.mxu0 0.0
    %1178 = vmatpush1.msra.mxu0 0.0
    %1179 = vmatprep.subr.mxu0 0.0
    %1180 = vmatpush1.msra.mxu0 0.0
    %1181 = vmatprep.subr.mxu0 0.0
    %1182 = vmatpush1.msra.mxu0 0.0
    %1183 = vmatprep.subr.mxu0 0.0
    %1184 = vmatpush1.msra.mxu0 0.0
    %1185 = vmatprep.subr.mxu0 0.0
    %1186 = vmatpush1.msra.mxu0 0.0
    %1187 = vmatprep.subr.mxu0 0.0
    %1188 = vmatpush1.msra.mxu0 0.0
    %1189 = vmatprep.subr.mxu0 0.0
    %1190 = vmatpush1.msra.mxu0 0.0
    %1191 = vmatprep.subr.mxu0 0.0
    %1192 = vmatpush1.msra.mxu0 0.0
    %1193 = vmatprep.subr.mxu0 0.0
    %1194 = vmatpush1.msra.mxu0 0.0
    %1195 = vmatprep.subr.mxu0 0.0
    %1196 = vmatpush1.msra.mxu0 0.0
    %1197 = vmatprep.subr.mxu0 0.0
    %1198 = vmatpush1.msra.mxu0 0.0
    %1199 = vmatprep.subr.mxu0 0.0
    %1200 = vmatpush1.msra.mxu0 0.0
    %1201 = vmatprep.subr.mxu0 0.0
    %1202 = vmatpush1.msra.mxu0 0.0
    %1203 = vmatprep.subr.mxu0 0.0
    %1204 = vmatpush1.msra.mxu0 0.0
    %1205 = vmatprep.subr.mxu0 0.0
    %1206 = vmatpush1.msra.mxu0 0.0
    %1207 = vmatprep.subr.mxu0 0.0
    %1208 = vmatpush1.msra.mxu0 0.0
    %1209 = vmatprep.subr.mxu0 0.0
    %1210 = vmatpush1.msra.mxu0 0.0
    %1211 = vmatprep.subr.mxu0 0.0
    %1212 = vmatpush1.msra.mxu0 0.0
    %1213 = vmatprep.subr.mxu0 0.0
    %1214 = vmatpush1.msra.mxu0 0.0
    %1215 = vmatprep.subr.mxu0 0.0
    %1216 = vmatpush1.msra.mxu0 0.0
    %1217 = vmatprep.subr.mxu0 0.0
    %1218 = vmatpush1.msra.mxu0 0.0
    %1219 = vmatprep.subr.mxu0 0.0
    %1220 = vmatpush1.msra.mxu0 0.0
    %1221 = vmatprep.subr.mxu0 0.0
    %1222 = vmatpush1.msra.mxu0 0.0
    %1223 = vmatprep.subr.mxu0 0.0
    %1224 = vmatpush1.msra.mxu0 0.0
    %1225 = vmatprep.subr.mxu0 0.0
    %1226 = vmatpush1.msra.mxu0 0.0
    %1227 = vmatprep.subr.mxu0 0.0
    %1228 = vmatpush1.msra.mxu0 0.0
    %1229 = vmatprep.subr.mxu0 0.0
    %1230 = vmatpush1.msra.mxu0 0.0
    %1231 = vmatprep.subr.mxu0 0.0
    %1232 = vmatpush1.msra.mxu0 0.0
    %1233 = vmatprep.mubr.f32.mxu0 0.0
    %1234 = vmatmul.mubr.f32.gmra.mrb[0].mxu0 %v1167
    %v1235 = vpop.f32.mrb[0].mxu0
    %v1236 = vadd.f32 0.0, %v1235
    %v1237 = vpop.f32.mrb[0].mxu0
    %1238 = vdwg.mxu0
    %v1240 = vsel %vm215, %v205, 0
    %1242 = vmatprep.subr.mxu0 0.0
    %1243 = vmatpush1.msra.mxu0 %v1164
    %1244 = vmatprep.subr.mxu0 0.0
    %1245 = vmatpush1.msra.mxu0 %v1165
    %1246 = vmatprep.subr.mxu0 0.0
    %1247 = vmatpush1.msra.mxu0 0.0
    %1248 = vmatprep.subr.mxu0 0.0
    %1249 = vmatpush1.msra.mxu0 0.0
    %1250 = vmatprep.subr.mxu0 0.0
    %1251 = vmatpush1.msra.mxu0 0.0
    %1252 = vmatprep.subr.mxu0 0.0
    %1253 = vmatpush1.msra.mxu0 0.0
    %1254 = vmatprep.subr.mxu0 0.0
    %1255 = vmatpush1.msra.mxu0 0.0
    %1256 = vmatprep.subr.mxu0 0.0
    %1257 = vmatpush1.msra.mxu0 0.0
    %1258 = vmatprep.subr.mxu0 0.0
    %1259 = vmatpush1.msra.mxu0 0.0
    %1260 = vmatprep.subr.mxu0 0.0
    %1261 = vmatpush1.msra.mxu0 0.0
    %1262 = vmatprep.subr.mxu0 0.0
    %1263 = vmatpush1.msra.mxu0 0.0
    %1264 = vmatprep.subr.mxu0 0.0
    %1265 = vmatpush1.msra.mxu0 0.0
    %1266 = vmatprep.subr.mxu0 0.0
    %1267 = vmatpush1.msra.mxu0 0.0
    %1268 = vmatprep.subr.mxu0 0.0
    %1269 = vmatpush1.msra.mxu0 0.0
    %1270 = vmatprep.subr.mxu0 0.0
    %1271 = vmatpush1.msra.mxu0 0.0
    %1272 = vmatprep.subr.mxu0 0.0
    %1273 = vmatpush1.msra.mxu0 0.0
    %1274 = vmatprep.subr.mxu0 0.0
    %1275 = vmatpush1.msra.mxu0 0.0
    %1276 = vmatprep.subr.mxu0 0.0
    %1277 = vmatpush1.msra.mxu0 0.0
    %1278 = vmatprep.subr.mxu0 0.0
    %1279 = vmatpush1.msra.mxu0 0.0
    %1280 = vmatprep.subr.mxu0 0.0
    %1281 = vmatpush1.msra.mxu0 0.0
    %1282 = vmatprep.subr.mxu0 0.0
    %1283 = vmatpush1.msra.mxu0 0.0
    %1284 = vmatprep.subr.mxu0 0.0
    %1285 = vmatpush1.msra.mxu0 0.0
    %1286 = vmatprep.subr.mxu0 0.0
    %1287 = vmatpush1.msra.mxu0 0.0
    %1288 = vmatprep.subr.mxu0 0.0
    %1289 = vmatpush1.msra.mxu0 0.0
    %1290 = vmatprep.subr.mxu0 0.0
    %1291 = vmatpush1.msra.mxu0 0.0
    %1292 = vmatprep.subr.mxu0 0.0
    %1293 = vmatpush1.msra.mxu0 0.0
    %1294 = vmatprep.subr.mxu0 0.0
    %1295 = vmatpush1.msra.mxu0 0.0
    %1296 = vmatprep.subr.mxu0 0.0
    %1297 = vmatpush1.msra.mxu0 0.0
    %1298 = vmatprep.subr.mxu0 0.0
    %1299 = vmatpush1.msra.mxu0 0.0
    %1300 = vmatprep.subr.mxu0 0.0
    %1301 = vmatpush1.msra.mxu0 0.0
    %1302 = vmatprep.subr.mxu0 0.0
    %1303 = vmatpush1.msra.mxu0 0.0
    %1304 = vmatprep.subr.mxu0 0.0
    %1305 = vmatpush1.msra.mxu0 0.0
    %1306 = vmatprep.mubr.f32.mxu0 0.0
    %1307 = vmatmul.mubr.f32.gmra.mrb[0].mxu0 %v1240
    %v1308 = vpop.f32.mrb[0].mxu0
    %v1309 = vadd.f32 0.0, %v1308
    %v1310 = vpop.f32.mrb[0].mxu0
    %1311 = vdwg.mxu0
    %v1312 = vadd.f32 %v1090, %v1236
    %v1313 = vadd.f32 %v1160, %v1309
    %v1314 = vld [vmem:[%s4 + $0x2] sm:$0x1]
    %v1315 = vlaneseq
    %v1316 = vshrl.u32 %v1315, 7
    %v1317 = vsub.s32 0, %v1316
    %v1318 = vrot.slane %v1314, %v1317
    %v1319 = vadd.f32 %v1312, %v1318
    %v1320 = vadd.f32 %v1313, %v1318
    %v1321 = vmax.f32 %v1319, 0.0
    %v1322 = vmax.f32 %v1320, 0.0
    %1323 = vrot.lane.b32.xlu0 %v1321, 64
    %v1324 = vpop.permute.xlu0 %1323
    %v1325 = vsel %vm364, %v1324, %v1321
    %1326 = vrot.lane.b32.xlu0 %v1322, 64
    %v1327 = vpop.permute.xlu0 %1326
    %v1328 = vsel %vm364, %v1327, %v1322
    %1329 = vrot.lane.b32.xlu0 %v1325, 64
    %v1330 = vpop.permute.xlu0 %1329
    %1331 = vrot.lane.b32.xlu0 %v1328, 64
    %v1332 = vpop.permute.xlu0 %1331
    %v1333 = vsel %vm364, %v1330, %v1321
    %v1334 = vsel %vm364, %v1332, %v1322
    %1337 = vrot.lane.b32.xlu0 %v1333, 80
    %v1338 = vpop.permute.xlu0 %1337
    %1339 = vrot.lane.b32.xlu0 %v1334, 80
    %v1340 = vpop.permute.xlu0 %1339
    %v1343 = vmax.f32 %v1321, %v1338
    %v1344 = vmax.f32 %v1322, %v1340
    %1345 = vrot.lane.b32.xlu0 %v1343, 64
    %v1346 = vpop.permute.xlu0 %1345
    %v1347 = vsel %vm364, %v1346, %v1343
    %1348 = vrot.lane.b32.xlu0 %v1344, 64
    %v1349 = vpop.permute.xlu0 %1348
    %v1350 = vsel %vm364, %v1349, %v1344
    %1351 = vrot.lane.b32.xlu0 %v1347, 64
    %v1352 = vpop.permute.xlu0 %1351
    %1353 = vrot.lane.b32.xlu0 %v1350, 64
    %v1354 = vpop.permute.xlu0 %1353
    %v1355 = vsel %vm364, %v1352, %v1343
    %v1356 = vsel %vm364, %v1354, %v1344
    %1359 = vrot.lane.b32.xlu0 %v1355, 96
    %v1360 = vpop.permute.xlu0 %1359
    %1361 = vrot.lane.b32.xlu0 %v1356, 96
    %v1362 = vpop.permute.xlu0 %1361
    %v1365 = vmax.f32 %v1343, %v1360
    %v1366 = vmax.f32 %v1344, %v1362
    %v1367 = vsel %vm215, %v1365, -inf
    %1368 = vmax.xlane.f32.xlu0 %v1367
    %v1369 = vpop.xlane.xlu0 %1368
    %v1370 = vsel %vm215, %v1366, -inf
    %1371 = vmax.xlane.f32.xlu0 %v1370
    %v1372 = vpop.xlane.xlu0 %1371
    %s1373 = scalar_lea.vmem %s5, 32
    %v1374 = vld [vmem:[%s1373] sm:$0xff]
    %v1375 = vmul.f32 %v1369, %v1374
    %v1376 = vmul.f32 %v1372, %v1374
    %v1377 = vadd.f32 %v875, %v1375
    %v1378 = vadd.f32 %v876, %v1376
    %vm1379 = vcmp.eq.f32.partialorder %v1365, %v1369
    %vm1380 = vcmp.eq.f32.partialorder %v1366, %v1372
    %v1381 = vsel %vm1379, %v207, 16
    %v1382 = vsel %vm1380, %v207, 16
    %v1383 = vsel %vm215, %v1381, 2147483647
    %v1384 = vand.u32 %v1383, 65535
    %v1385 = vshra.s32 %v1383, 16
    %v1386 = vcvt.s32.f32 %v1384
    %v1387 = vcvt.s32.f32 %v1385
    %1388 = vmin.xlane.f32.xlu0 %v1387
    %v1389 = vpop.xlane.xlu0 %1388
    %vm1390 = vcmp.eq.f32.partialorder %v1387, %v1389
    %v1391 = vsel %vm1390, %v1386, inf
    %1392 = vmin.xlane.f32.xlu0 %v1391
    %v1393 = vpop.xlane.xlu0 %1392
    %v1394 = vcvt.f32.s32 %v1393
    %v1395 = vcvt.f32.s32 %v1389
    %v1396 = vshll.u32 %v1395, 16
    %v1397 = vadd.s32 %v1396, %v1394
    %v1398 = vsel %vm215, %v1382, 2147483647
    %v1399 = vand.u32 %v1398, 65535
    %v1400 = vshra.s32 %v1398, 16
    %v1401 = vcvt.s32.f32 %v1399
    %v1402 = vcvt.s32.f32 %v1400
    %1403 = vmin.xlane.f32.xlu0 %v1402
    %v1404 = vpop.xlane.xlu0 %1403
    %vm1405 = vcmp.eq.f32.partialorder %v1402, %v1404
    %v1406 = vsel %vm1405, %v1401, inf
    %1407 = vmin.xlane.f32.xlu0 %v1406
    %v1408 = vpop.xlane.xlu0 %1407
    %v1409 = vcvt.f32.s32 %v1408
    %v1410 = vcvt.f32.s32 %v1404
    %v1411 = vshll.u32 %v1410, 16
    %v1412 = vadd.s32 %v1411, %v1409
    %vm1413 = vcmp.eq.s32.totalorder %v207, %v1397
    %vm1414 = vcmp.eq.s32.totalorder %v207, %v1412
    %v1415 = vsel %vm1413, -1.0, %v1365
    %v1416 = vsel %vm1414, -1.0, %v1366
    %v1417 = vsel %vm215, %v1415, -inf
    %1418 = vmax.xlane.f32.xlu0 %v1417
    %v1419 = vpop.xlane.xlu0 %1418
    %v1420 = vsel %vm215, %v1416, -inf
    %1421 = vmax.xlane.f32.xlu0 %v1420
    %v1422 = vpop.xlane.xlu0 %1421
    %s1423 = scalar_lea.vmem %s5, 40
    %v1424 = vld [vmem:[%s1423] sm:$0xff]
    %v1425 = vmul.f32 %v1419, %v1424
    %v1426 = vmul.f32 %v1422, %v1424
    %v1427 = vadd.f32 %v1377, %v1425
    %v1428 = vadd.f32 %v1378, %v1426
    %v1429 = vsel %vm55, %v1427, 0.0
    %v1430 = vrot.slane %v1429, 4
    %v1431 = vadd.f32 %v1429, %v1430
    %v1432 = vrot.slane %v1431, 2
    %v1433 = vadd.f32 %v1431, %v1432
    %v1434 = vrot.slane %v1433, 1
    %v1435 = vadd.f32 %v1433, %v1434
    %v1436 = vsel %vm55, %v1428, 0.0
    %v1437 = vrot.slane %v1436, 4
    %v1438 = vadd.f32 %v1436, %v1437
    %v1439 = vrot.slane %v1438, 2
    %v1440 = vadd.f32 %v1438, %v1439
    %v1441 = vrot.slane %v1440, 1
    %v1442 = vadd.f32 %v1440, %v1441
    %v1443 = vld [vmem:[%s2] sm:$0x3]
    %vm1444 = vcmask 58368
    %v1445 = vsel %vm1444, %v1443, -inf
    %1446 = vmax.xlane.f32.xlu0 %v1445
    %v1447 = vpop.xlane.xlu0 %1446
    %v1448 = vsub.f32 %v1443, %v1447
    %v1449 = vmul.f32 %v1448, 1.442695
    %v1450 = vpow.pop %v1449
    %v1451 = vsel %vm1444, %v1450, 0.0
    %1452 = vadd.xlane.f32.xlu0 %v1451
    %v1453 = vpop.xlane.xlu0 %1452
    %v1454 = vrcp.pop %v1453
    %v1455 = vmul.f32 %v1450, %v1454
    %s1456 = scalar_lea.vmem %s5, 48
    %v1457 = vld [vmem:[%s1456] sm:$0xff]
    %vm1458 = vcmask 64512
    %v1460 = vsel %vm1458, %v1455, 0
    %1462 = vmatprep.subr.mxu0 0.0
    %1463 = vmatpush1.msra.mxu0 %v1457
    %1464 = vmatprep.subr.mxu0 0.0
    %1465 = vmatpush1.msra.mxu0 0.0
    %1466 = vmatprep.subr.mxu0 0.0
    %1467 = vmatpush1.msra.mxu0 0.0
    %1468 = vmatprep.subr.mxu0 0.0
    %1469 = vmatpush1.msra.mxu0 0.0
    %1470 = vmatprep.subr.mxu0 0.0
    %1471 = vmatpush1.msra.mxu0 0.0
    %1472 = vmatprep.subr.mxu0 0.0
    %1473 = vmatpush1.msra.mxu0 0.0
    %1474 = vmatprep.subr.mxu0 0.0
    %1475 = vmatpush1.msra.mxu0 0.0
    %1476 = vmatprep.subr.mxu0 0.0
    %1477 = vmatpush1.msra.mxu0 0.0
    %1478 = vmatprep.subr.mxu0 0.0
    %1479 = vmatpush1.msra.mxu0 0.0
    %1480 = vmatprep.subr.mxu0 0.0
    %1481 = vmatpush1.msra.mxu0 0.0
    %1482 = vmatprep.subr.mxu0 0.0
    %1483 = vmatpush1.msra.mxu0 0.0
    %1484 = vmatprep.subr.mxu0 0.0
    %1485 = vmatpush1.msra.mxu0 0.0
    %1486 = vmatprep.subr.mxu0 0.0
    %1487 = vmatpush1.msra.mxu0 0.0
    %1488 = vmatprep.subr.mxu0 0.0
    %1489 = vmatpush1.msra.mxu0 0.0
    %1490 = vmatprep.subr.mxu0 0.0
    %1491 = vmatpush1.msra.mxu0 0.0
    %1492 = vmatprep.subr.mxu0 0.0
    %1493 = vmatpush1.msra.mxu0 0.0
    %1494 = vmatprep.subr.mxu0 0.0
    %1495 = vmatpush1.msra.mxu0 0.0
    %1496 = vmatprep.subr.mxu0 0.0
    %1497 = vmatpush1.msra.mxu0 0.0
    %1498 = vmatprep.subr.mxu0 0.0
    %1499 = vmatpush1.msra.mxu0 0.0
    %1500 = vmatprep.subr.mxu0 0.0
    %1501 = vmatpush1.msra.mxu0 0.0
    %1502 = vmatprep.subr.mxu0 0.0
    %1503 = vmatpush1.msra.mxu0 0.0
    %1504 = vmatprep.subr.mxu0 0.0
    %1505 = vmatpush1.msra.mxu0 0.0
    %1506 = vmatprep.subr.mxu0 0.0
    %1507 = vmatpush1.msra.mxu0 0.0
    %1508 = vmatprep.subr.mxu0 0.0
    %1509 = vmatpush1.msra.mxu0 0.0
    %1510 = vmatprep.subr.mxu0 0.0
    %1511 = vmatpush1.msra.mxu0 0.0
    %1512 = vmatprep.subr.mxu0 0.0
    %1513 = vmatpush1.msra.mxu0 0.0
    %1514 = vmatprep.subr.mxu0 0.0
    %1515 = vmatpush1.msra.mxu0 0.0
    %1516 = vmatprep.subr.mxu0 0.0
    %1517 = vmatpush1.msra.mxu0 0.0
    %1518 = vmatprep.subr.mxu0 0.0
    %1519 = vmatpush1.msra.mxu0 0.0
    %1520 = vmatprep.subr.mxu0 0.0
    %1521 = vmatpush1.msra.mxu0 0.0
    %1522 = vmatprep.subr.mxu0 0.0
    %1523 = vmatpush1.msra.mxu0 0.0
    %1524 = vmatprep.subr.mxu0 0.0
    %1525 = vmatpush1.msra.mxu0 0.0
    %1526 = vmatprep.mubr.f32.mxu0 0.0
    %1527 = vmatmul.mubr.f32.gmra.mrb[0].mxu0 %v1460
    %v1528 = vpop.f32.mrb[0].mxu0
    %v1529 = vadd.f32 0.0, %v1528
    %v1530 = vpop.f32.mrb[0].mxu0
    %1531 = vdwg.mxu0
    %v1533 = vrot.slane %v1529, 1
    %v1536 = vadd.f32 %v1435, %v1529
    %v1537 = vadd.f32 %v1442, %v1533
    %v1538 = vld [vmem:[%s6] sm:$0xff]
    %v1539 = vld [vmem:[%s6 + $0x8] sm:$0xff]
    %v1540 = vld [vmem:[%s6 + $0x10] sm:$0xff]
    %v1541 = vld [vmem:[%s6 + $0x18] sm:$0xff]
    %v1542 = vld [vmem:[%s6 + $0x20] sm:$0x1]
    %v1543 = vld [vmem:[%s6 + $0x21] sm:$0x1]
    %v1544 = vld [vmem:[%s6 + $0x22] sm:$0x1]
    %v1545 = vld [vmem:[%s6 + $0x23] sm:$0x1]
    %v1546 = vlaneseq
    %v1547 = vshrl.u32 %v1546, 7
    %v1548 = vsub.s32 0, %v1547
    %v1549 = vrot.slane %v1542, %v1548
    %v1550 = vadd.f32 %v1536, %v1549
    %v1551 = vadd.f32 %v1537, %v1549
    %v1552 = vmax.f32 %v1550, 0.0
    %v1553 = vmax.f32 %v1551, 0.0
    %v1554 = vlaneseq
    %v1555 = vshrl.u32 %v1554, 7
    %v1556 = vsub.s32 0, %v1555
    %v1557 = vrot.slane %v1543, %v1556
    %v1560 = vrot.slane %v1553, 7
    %vm1561 = vcmask 1041409
    %v1562 = vsel %vm1561, %v1560, %v1552
    %v1563 = vsel %vm55, %v1562, 0
    %1565 = vmatprep.subr.mxu0 0.0
    %1566 = vmatpush1.msra.mxu0 %v1538
    %1567 = vmatprep.subr.mxu0 0.0
    %1568 = vmatpush1.msra.mxu0 %v1539
    %1569 = vmatprep.subr.mxu0 0.0
    %1570 = vmatpush1.msra.mxu0 %v1540
    %1571 = vmatprep.subr.mxu0 0.0
    %1572 = vmatpush1.msra.mxu0 %v1541
    %1573 = vmatprep.subr.mxu0 0.0
    %1574 = vmatpush1.msra.mxu0 0.0
    %1575 = vmatprep.subr.mxu0 0.0
    %1576 = vmatpush1.msra.mxu0 0.0
    %1577 = vmatprep.subr.mxu0 0.0
    %1578 = vmatpush1.msra.mxu0 0.0
    %1579 = vmatprep.subr.mxu0 0.0
    %1580 = vmatpush1.msra.mxu0 0.0
    %1581 = vmatprep.subr.mxu0 0.0
    %1582 = vmatpush1.msra.mxu0 0.0
    %1583 = vmatprep.subr.mxu0 0.0
    %1584 = vmatpush1.msra.mxu0 0.0
    %1585 = vmatprep.subr.mxu0 0.0
    %1586 = vmatpush1.msra.mxu0 0.0
    %1587 = vmatprep.subr.mxu0 0.0
    %1588 = vmatpush1.msra.mxu0 0.0
    %1589 = vmatprep.subr.mxu0 0.0
    %1590 = vmatpush1.msra.mxu0 0.0
    %1591 = vmatprep.subr.mxu0 0.0
    %1592 = vmatpush1.msra.mxu0 0.0
    %1593 = vmatprep.subr.mxu0 0.0
    %1594 = vmatpush1.msra.mxu0 0.0
    %1595 = vmatprep.subr.mxu0 0.0
    %1596 = vmatpush1.msra.mxu0 0.0
    %1597 = vmatprep.subr.mxu0 0.0
    %1598 = vmatpush1.msra.mxu0 0.0
    %1599 = vmatprep.subr.mxu0 0.0
    %1600 = vmatpush1.msra.mxu0 0.0
    %1601 = vmatprep.subr.mxu0 0.0
    %1602 = vmatpush1.msra.mxu0 0.0
    %1603 = vmatprep.subr.mxu0 0.0
    %1604 = vmatpush1.msra.mxu0 0.0
    %1605 = vmatprep.subr.mxu0 0.0
    %1606 = vmatpush1.msra.mxu0 0.0
    %1607 = vmatprep.subr.mxu0 0.0
    %1608 = vmatpush1.msra.mxu0 0.0
    %1609 = vmatprep.subr.mxu0 0.0
    %1610 = vmatpush1.msra.mxu0 0.0
    %1611 = vmatprep.subr.mxu0 0.0
    %1612 = vmatpush1.msra.mxu0 0.0
    %1613 = vmatprep.subr.mxu0 0.0
    %1614 = vmatpush1.msra.mxu0 0.0
    %1615 = vmatprep.subr.mxu0 0.0
    %1616 = vmatpush1.msra.mxu0 0.0
    %1617 = vmatprep.subr.mxu0 0.0
    %1618 = vmatpush1.msra.mxu0 0.0
    %1619 = vmatprep.subr.mxu0 0.0
    %1620 = vmatpush1.msra.mxu0 0.0
    %1621 = vmatprep.subr.mxu0 0.0
    %1622 = vmatpush1.msra.mxu0 0.0
    %1623 = vmatprep.subr.mxu0 0.0
    %1624 = vmatpush1.msra.mxu0 0.0
    %1625 = vmatprep.subr.mxu0 0.0
    %1626 = vmatpush1.msra.mxu0 0.0
    %1627 = vmatprep.subr.mxu0 0.0
    %1628 = vmatpush1.msra.mxu0 0.0
    %1629 = vmatprep.mubr.f32.mxu0 0.0
    %1630 = vmatmul.mubr.f32.gmra.mrb[0].mxu0 %v1563
    %v1631 = vpop.f32.mrb[0].mxu0
    %v1632 = vadd.f32 %v1557, %v1631
    %v1633 = vpop.f32.mrb[0].mxu0
    %1634 = vdwg.mxu0
    %v1635 = vmax.f32 %v1632, 0.0
    %v1636 = vlaneseq
    %v1637 = vshrl.u32 %v1636, 7
    %v1638 = vsub.s32 0, %v1637
    %v1639 = vrot.slane %v1544, %v1638
    %v1640 = vmul.f32 %v1635, %v1639
    %vm1641 = vcmask 254976
    %v1642 = vsel %vm1641, %v1640, 0.0
    %1643 = vadd.xlane.f32.xlu0 %v1642
    %v1644 = vpop.xlane.xlu0 %1643
    %v1645 = vlaneseq
    %v1646 = vshrl.u32 %v1645, 7
    %v1647 = vsub.s32 0, %v1646
    %v1648 = vrot.slane %v1545, %v1647
    %v1649 = vadd.f32 %v1644, %v1648
    %vm1650 = vcmask 1024
    %1651 = vst.msk [vmem:[%s7] sm:$0x3] %vm1650, %v1649
    // Predicated region
    $region34: #{tpu_custom_call.1} parent=1 // pred_check
      _
    $region35: #{tpu_custom_call.1} parent=1 // pred_check_branch
      %1653 = sbr.rel (0) target = $region37
    $region36: #{tpu_custom_call.1} parent=1 // pred_region
      _
    $region37: #{tpu_custom_call.1} parent=1 // pred_fallthru
      _
    // Predicated region
    $region38: #{tpu_custom_call.1} parent=1 // pred_check
      _
    $region39: #{tpu_custom_call.1} parent=1 // pred_check_branch
      %1655 = sbr.rel (0) target = $region41
    $region40: #{tpu_custom_call.1} parent=1 // pred_region
      _
    $region41: #{tpu_custom_call.1} parent=1 // pred_fallthru
      _
    %1656 = vsyncpa [#allocation3], 1

</llo_original>
